<compile_context>
chip_gen: v6e
topology: v6e:2x2x1
jax: 0.10.0
libtpu: 0.0.40
codegen_flags: <defaults>
</compile_context>

<pallas_src>
import jax
import jax.numpy as jnp
from jax.experimental import pallas as pl
from jax.experimental.pallas import tpu as pltpu

_LANE = 128


def _round_up(x, m):
    return ((x + m - 1) // m) * m


def _pad_axis(a, axis, target):
    cur = a.shape[axis]
    if cur == target:
        return a
    pads = [(0, 0)] * a.ndim
    pads[axis] = (0, target - cur)
    return jnp.pad(a, pads)


def _device_tiling_config():
    """(weight_block_budget_bytes, vmem_limit_bytes) per TPU generation.

    v5e/v6e have 128 MiB physical VMEM -> large double-buffered weight blocks are
    fine (bn up to 2048 for the 9216-wide layer). v7x has only 64 MiB per
    TensorCore -> cap the block budget so 2 x block stays well under that.
    """
    try:
        info = pltpu.get_tpu_info()
        vmem_bytes = getattr(info, "vmem_capacity_bytes", 64 * 1024 * 1024)
    except Exception:  # pragma: no cover - conservative fallback
        vmem_bytes = 64 * 1024 * 1024
    if vmem_bytes >= 100 * 1024 * 1024:          # v5e / v6e (128 MiB VMEM)
        return 36 * 1024 * 1024, 96 * 1024 * 1024
    return 18 * 1024 * 1024, 48 * 1024 * 1024    # v7x (64 MiB VMEM per TC)


def _choose_bn(k_dim, n_dim, itemsize, budget):
    """Largest N tile: divisor of n_dim, multiple of 128, full-K block under budget.

    When n_dim allows it, keep at least two tiles along N so the 'parallel' grid
    axis can still shard across v7x's two TensorCores.
    """
    cap = max(budget // (k_dim * itemsize), _LANE)
    if n_dim >= 2 * _LANE:
        cap = min(cap, n_dim // 2)
    cap = max((cap // _LANE) * _LANE, _LANE)
    t = cap
    while t > _LANE:
        if n_dim % t == 0:
            return t
        t -= _LANE
    return _LANE


def _linear_relu_kernel(x_ref, w_ref, b_ref, o_ref):
    # Full-K column block: single MXU matmul with f32 accumulation, fused bias + ReLU.
    acc = jnp.dot(x_ref[...], w_ref[...], preferred_element_type=jnp.float32)
    acc = acc + b_ref[...].astype(jnp.float32)
    o_ref[...] = jnp.maximum(acc, 0.0).astype(o_ref.dtype)


def _hidden_head_kernel(h_ref, w2_ref, b2_ref, w3_ref, p_ref):
    # Layer-2 column block: relu(h @ w2[:, j] + b2[j]) with f32 accumulation.
    h2 = jnp.dot(h_ref[...], w2_ref[...], preferred_element_type=jnp.float32)
    h2 = jnp.maximum(h2 + b2_ref[...].astype(jnp.float32), 0.0)
    # Fused layer-3 partial product for this j block (lane-dense, 128-padded output).
    p = jnp.dot(h2.astype(w3_ref.dtype), w3_ref[...],
                preferred_element_type=jnp.float32)
    p_ref[...] = p[None]


def linear_relu(x, w, b):
    """h = relu(x @ w + b); bf16 in/out, f32 accumulation; single Pallas kernel."""
    M, K = x.shape
    K2, N = w.shape
    assert K == K2 and b.shape == (N,)

    kp = _round_up(K, _LANE)
    np_ = _round_up(N, _LANE)
    xk = _pad_axis(x, 1, kp)
    wp = _pad_axis(_pad_axis(w, 0, kp), 1, np_)
    bp = _pad_axis(b, 0, np_).reshape(1, np_)

    budget, vmem_limit = _device_tiling_config()
    bn = _choose_bn(kp, np_, xk.dtype.itemsize, budget)
    nj = np_ // bn

    out = pl.pallas_call(
        _linear_relu_kernel,
        out_shape=jax.ShapeDtypeStruct((M, np_), x.dtype),
        grid_spec=pltpu.PrefetchScalarGridSpec(
            num_scalar_prefetch=0,
            grid=(nj,),  # batch rows kept fully resident (bm = M)
            in_specs=[
                pl.BlockSpec((M, kp), lambda j: (0, 0)),    # x resident across j
                pl.BlockSpec((kp, bn), lambda j: (0, j)),   # full-K weight column
                pl.BlockSpec((1, bn), lambda j: (0, j)),    # bias slice
            ],
            out_specs=pl.BlockSpec((M, bn), lambda j: (0, j)),
        ),
        compiler_params=pltpu.CompilerParams(
            dimension_semantics=("parallel",),
            vmem_limit_bytes=vmem_limit,
        ),
        cost_estimate=pl.CostEstimate(
            flops=2 * M * kp * np_,
            transcendentals=0,
            bytes_accessed=(xk.size * xk.dtype.itemsize
                            + wp.size * wp.dtype.itemsize
                            + bp.size * bp.dtype.itemsize
                            + M * np_ * xk.dtype.itemsize),
        ),
    )(xk, wp, bp)

    return out if np_ == N else out[:, :N]


def hidden_and_head(h, w2, b2, w3, b3):
    """logits = relu(h @ w2 + b2) @ w3 + b3, with the tiny head fused per N tile."""
    M, K = h.shape
    K2, N = w2.shape
    N2, D = w3.shape
    assert K == K2 and N == N2 and b2.shape == (N,) and b3.shape == (D,)

    kp = _round_up(K, _LANE)
    np_ = _round_up(N, _LANE)
    dp = _round_up(D, _LANE)          # lane-dense head width (no masked narrow stores)

    hp = _pad_axis(h, 1, kp)
    w2p = _pad_axis(_pad_axis(w2, 0, kp), 1, np_)
    b2p = _pad_axis(b2, 0, np_).reshape(1, np_)
    w3p = _pad_axis(_pad_axis(w3, 0, np_), 1, dp)

    budget, vmem_limit = _device_tiling_config()
    bn = _choose_bn(kp, np_, hp.dtype.itemsize, budget)
    nj = np_ // bn

    partials = pl.pallas_call(
        _hidden_head_kernel,
        out_shape=jax.ShapeDtypeStruct((nj, M, dp), jnp.float32),
        grid_spec=pltpu.PrefetchScalarGridSpec(
            num_scalar_prefetch=0,
            grid=(nj,),
            in_specs=[
                pl.BlockSpec((M, kp), lambda j: (0, 0)),    # h resident across j
                pl.BlockSpec((kp, bn), lambda j: (0, j)),   # w2 column block
                pl.BlockSpec((1, bn), lambda j: (0, j)),    # b2 slice
                pl.BlockSpec((bn, dp), lambda j: (j, 0)),   # w3 rows for this j
            ],
            out_specs=pl.BlockSpec((1, M, dp), lambda j: (j, 0, 0)),
        ),
        compiler_params=pltpu.CompilerParams(
            dimension_semantics=("parallel",),
            vmem_limit_bytes=vmem_limit,
        ),
        cost_estimate=pl.CostEstimate(
            flops=2 * M * kp * np_ + 2 * M * np_ * dp,
            transcendentals=0,
            bytes_accessed=(hp.size * hp.dtype.itemsize
                            + w2p.size * w2p.dtype.itemsize
                            + b2p.size * b2p.dtype.itemsize
                            + w3p.size * w3p.dtype.itemsize
                            + nj * M * dp * 4),
        ),
    )(hp, w2p, b2p, w3p)

    # Tiny (nj x M x 128) reduction + bias + un-pad in plain XLA (layer-3 epilogue).
    logits = partials.sum(axis=0)[:, :D] + b3.astype(jnp.float32)
    return logits


def init_discriminator224_params(key, input_size, hidden, num_domains,
                                 dtype=jnp.bfloat16):
    """Synthetic params mirroring nn.Linear fan-in init, stored in bf16 so the
    (weight-DMA-bound) kernels stream half the HBM bytes of f32."""
    ks = jax.random.split(key, 6)

    def lin(kw, kb, fan_in, fan_out):
        bound = 1.0 / (fan_in ** 0.5)
        w = jax.random.uniform(kw, (fan_in, fan_out), jnp.float32, -bound, bound)
        b = jax.random.uniform(kb, (fan_out,), jnp.float32, -bound, bound)
        return w.astype(dtype), b.astype(dtype)

    w1, b1 = lin(ks[0], ks[1], input_size, hidden)
    w2, b2 = lin(ks[2], ks[3], hidden, hidden)
    w3, b3 = lin(ks[4], ks[5], hidden, num_domains)
    return dict(w1=w1, b1=b1, w2=w2, b2=b2, w3=w3, b3=b3)


@jax.jit
def discriminator224_forward(x, lambda_p, params):
    # ReverseLayerF.apply(x, lambda_p): identity in the forward pass (lambda_p unused).
    del lambda_p
    # nn.Dropout (eval mode): identity.
    xb = x.astype(jnp.bfloat16)
    h1 = linear_relu(xb, params["w1"], params["b1"])                # Pallas kernel 1
    return hidden_and_head(h1, params["w2"], params["b2"],
                           params["w3"], params["b3"])              # Pallas kernel 2 (L2 + fused L3)


if __name__ == "__main__":
    # Small shapes consistent with the module's MLP structure:
    #   batch=8, input_size=384 (stand-in for 256*6*6=9216), hidden=256 (stand-in
    #   for 4096), num_domains=3 (exercises the lane-padding path of the head).
    batch = 8
    input_size = 384
    hidden = 256
    num_domains = 3

    key = jax.random.PRNGKey(0)
    k_x, k_p = jax.random.split(key)

    x = jax.random.normal(k_x, (batch, input_size), dtype=jnp.float32)
    lambda_p = jnp.float32(0.5)
    params = init_discriminator224_params(k_p, input_size, hidden, num_domains)

    out = discriminator224_forward(x, lambda_p, params)
    jax.block_until_ready(out)
    assert out.shape == (batch, num_domains)
    assert out.dtype == jnp.float32

    # Pure-JAX reference following the identical dtype path (bf16 params/activations,
    # f32 accumulation) -- eval-mode semantics of the PyTorch module.
    xb = x.astype(jnp.bfloat16)
    h1 = jnp.maximum(
        jnp.dot(xb, params["w1"], preferred_element_type=jnp.float32)
        + params["b1"].astype(jnp.float32), 0.0).astype(jnp.bfloat16)
    h2 = jnp.maximum(
        jnp.dot(h1, params["w2"], preferred_element_type=jnp.float32)
        + params["b2"].astype(jnp.float32), 0.0).astype(jnp.bfloat16)
    ref = (jnp.dot(h2, params["w3"], preferred_element_type=jnp.float32)
           + params["b3"].astype(jnp.float32))

    assert jnp.allclose(out, ref, atol=2e-2, rtol=2e-2), float(
        jnp.max(jnp.abs(out - ref)))

    print("KERNEL_OK")
</pallas_src>

<mosaic_0001>
module attributes {stable_mosaic.version = 11 : i64} {
  func.func @_linear_relu_kernel(%arg0: i32, %arg1: memref<8x384xbf16, #tpu.memory_space<vmem>>, %arg2: memref<384x128xbf16, #tpu.memory_space<vmem>>, %arg3: memref<1x128xbf16, #tpu.memory_space<vmem>>, %arg4: memref<8x128xbf16, #tpu.memory_space<vmem>>) attributes {dimension_semantics = [#tpu.dimension_semantics<parallel>], iteration_bounds = array<i64: 2>, scalar_prefetch = 0 : i64, scratch_operands = 0 : i64, tpu.core_type = #tpu.core_type<tc>, window_params = [{pipeline_mode = #tpu.pipeline_mode<synchronous>, transform_indices = @transform_0, window_bounds = array<i64: 8, 384>}, {transform_indices = @transform_1, window_bounds = array<i64: 384, 128>}, {transform_indices = @transform_2, window_bounds = array<i64: 1, 128>}, {transform_indices = @transform_3, window_bounds = array<i64: 8, 128>}]} {
    %c0 = arith.constant 0 : index
    %c0_0 = arith.constant 0 : index
    %0 = vector.load %arg1[%c0, %c0_0] : memref<8x384xbf16, #tpu.memory_space<vmem>>, vector<8x384xbf16>
    %c0_1 = arith.constant 0 : index
    %c0_2 = arith.constant 0 : index
    %1 = vector.load %arg2[%c0_1, %c0_2] : memref<384x128xbf16, #tpu.memory_space<vmem>>, vector<384x128xbf16>
    %cst = arith.constant dense<0.000000e+00> : vector<8x128xf32>
    %2 = tpu.matmul %0, %1, %cst {dimension_numbers = #tpu.dot_dimension_numbers<[1], [0], [0], [1], [0, 0, 1, 1], [], []>} : vector<8x384xbf16>, vector<384x128xbf16>, vector<8x128xf32> -> vector<8x128xf32>
    %c0_3 = arith.constant 0 : index
    %c0_4 = arith.constant 0 : index
    %3 = vector.load %arg3[%c0_3, %c0_4] : memref<1x128xbf16, #tpu.memory_space<vmem>>, vector<1x128xbf16>
    %4 = arith.extf %3 : vector<1x128xbf16> to vector<1x128xf32>
    %5 = vector.broadcast %4 : vector<1x128xf32> to vector<8x128xf32>
    %6 = arith.addf %2, %5 : vector<8x128xf32>
    %cst_5 = arith.constant 0.000000e+00 : f32
    %7 = vector.broadcast %cst_5 : f32 to vector<8x128xf32>
    %8 = arith.maximumf %6, %7 : vector<8x128xf32>
    %9 = arith.truncf %8 : vector<8x128xf32> to vector<8x128xbf16>
    %c0_6 = arith.constant 0 : index
    %c0_7 = arith.constant 0 : index
    %10 = vector.load %arg4[%c0_6, %c0_7] : memref<8x128xbf16, #tpu.memory_space<vmem>>, vector<8x128xbf16>
    tpu.vector_store %arg4[%c0_6, %c0_7], %9 {strides = array<i32>} : memref<8x128xbf16, #tpu.memory_space<vmem>>, vector<8x128xbf16>,
    return
  }
  func.func @transform_0(%arg0: i32) -> (i32, i32) {
    %c0_i32 = arith.constant 0 : i32
    %c0_i32_0 = arith.constant 0 : i32
    %c0_i32_1 = arith.constant 0 : i32
    return %c0_i32, %c0_i32_0 : i32, i32
  }
  func.func @transform_1(%arg0: i32) -> (i32, i32) {
    %c0_i32 = arith.constant 0 : i32
    %c0_i32_0 = arith.constant 0 : i32
    return %c0_i32, %arg0 : i32, i32
  }
  func.func @transform_2(%arg0: i32) -> (i32, i32) {
    %c0_i32 = arith.constant 0 : i32
    %c0_i32_0 = arith.constant 0 : i32
    return %c0_i32, %arg0 : i32, i32
  }
  func.func @transform_3(%arg0: i32) -> (i32, i32) {
    %c0_i32 = arith.constant 0 : i32
    %c0_i32_0 = arith.constant 0 : i32
    return %c0_i32, %arg0 : i32, i32
  }
}

module attributes {stable_mosaic.version = 11 : i64} {
  func.func @_hidden_head_kernel(%arg0: i32, %arg1: memref<8x256xbf16, #tpu.memory_space<vmem>>, %arg2: memref<256x128xbf16, #tpu.memory_space<vmem>>, %arg3: memref<1x128xbf16, #tpu.memory_space<vmem>>, %arg4: memref<128x128xbf16, #tpu.memory_space<vmem>>, %arg5: memref<1x8x128xf32, #tpu.memory_space<vmem>>) attributes {dimension_semantics = [#tpu.dimension_semantics<parallel>], iteration_bounds = array<i64: 2>, scalar_prefetch = 0 : i64, scratch_operands = 0 : i64, tpu.core_type = #tpu.core_type<tc>, window_params = [{pipeline_mode = #tpu.pipeline_mode<synchronous>, transform_indices = @transform_0, window_bounds = array<i64: 8, 256>}, {transform_indices = @transform_1, window_bounds = array<i64: 256, 128>}, {transform_indices = @transform_2, window_bounds = array<i64: 1, 128>}, {transform_indices = @transform_3, window_bounds = array<i64: 128, 128>}, {transform_indices = @transform_4, window_bounds = array<i64: 1, 8, 128>}]} {
    %c0 = arith.constant 0 : index
    %c0_0 = arith.constant 0 : index
    %0 = vector.load %arg1[%c0, %c0_0] : memref<8x256xbf16, #tpu.memory_space<vmem>>, vector<8x256xbf16>
    %c0_1 = arith.constant 0 : index
    %c0_2 = arith.constant 0 : index
    %1 = vector.load %arg2[%c0_1, %c0_2] : memref<256x128xbf16, #tpu.memory_space<vmem>>, vector<256x128xbf16>
    %cst = arith.constant dense<0.000000e+00> : vector<8x128xf32>
    %2 = tpu.matmul %0, %1, %cst {dimension_numbers = #tpu.dot_dimension_numbers<[1], [0], [0], [1], [0, 0, 1, 1], [], []>} : vector<8x256xbf16>, vector<256x128xbf16>, vector<8x128xf32> -> vector<8x128xf32>
    %c0_3 = arith.constant 0 : index
    %c0_4 = arith.constant 0 : index
    %3 = vector.load %arg3[%c0_3, %c0_4] : memref<1x128xbf16, #tpu.memory_space<vmem>>, vector<1x128xbf16>
    %4 = arith.extf %3 : vector<1x128xbf16> to vector<1x128xf32>
    %5 = vector.broadcast %4 : vector<1x128xf32> to vector<8x128xf32>
    %6 = arith.addf %2, %5 : vector<8x128xf32>
    %cst_5 = arith.constant 0.000000e+00 : f32
    %7 = vector.broadcast %cst_5 : f32 to vector<8x128xf32>
    %8 = arith.maximumf %6, %7 : vector<8x128xf32>
    %9 = arith.truncf %8 : vector<8x128xf32> to vector<8x128xbf16>
    %c0_6 = arith.constant 0 : index
    %c0_7 = arith.constant 0 : index
    %10 = vector.load %arg4[%c0_6, %c0_7] : memref<128x128xbf16, #tpu.memory_space<vmem>>, vector<128x128xbf16>
    %cst_8 = arith.constant dense<0.000000e+00> : vector<8x128xf32>
    %11 = tpu.matmul %9, %10, %cst_8 {dimension_numbers = #tpu.dot_dimension_numbers<[1], [0], [0], [1], [0, 0, 1, 1], [], []>} : vector<8x128xbf16>, vector<128x128xbf16>, vector<8x128xf32> -> vector<8x128xf32>
    %12 = vector.shape_cast %11 : vector<8x128xf32> to vector<1x8x128xf32>
    %c0_9 = arith.constant 0 : index
    %c0_10 = arith.constant 0 : index
    %c0_11 = arith.constant 0 : index
    %13 = vector.load %arg5[%c0_9, %c0_10, %c0_11] : memref<1x8x128xf32, #tpu.memory_space<vmem>>, vector<1x8x128xf32>
    tpu.vector_store %arg5[%c0_9, %c0_10, %c0_11], %12 {strides = array<i32>} : memref<1x8x128xf32, #tpu.memory_space<vmem>>, vector<1x8x128xf32>,
    return
  }
  func.func @transform_0(%arg0: i32) -> (i32, i32) {
    %c0_i32 = arith.constant 0 : i32
    %c0_i32_0 = arith.constant 0 : i32
    %c0_i32_1 = arith.constant 0 : i32
    return %c0_i32, %c0_i32_0 : i32, i32
  }
  func.func @transform_1(%arg0: i32) -> (i32, i32) {
    %c0_i32 = arith.constant 0 : i32
    %c0_i32_0 = arith.constant 0 : i32
    return %c0_i32, %arg0 : i32, i32
  }
  func.func @transform_2(%arg0: i32) -> (i32, i32) {
    %c0_i32 = arith.constant 0 : i32
    %c0_i32_0 = arith.constant 0 : i32
    return %c0_i32, %arg0 : i32, i32
  }
  func.func @transform_3(%arg0: i32) -> (i32, i32) {
    %c0_i32 = arith.constant 0 : i32
    %c0_i32_0 = arith.constant 0 : i32
    return %arg0, %c0_i32 : i32, i32
  }
  func.func @transform_4(%arg0: i32) -> (i32, i32, i32) {
    %c0_i32 = arith.constant 0 : i32
    %c0_i32_0 = arith.constant 0 : i32
    %c0_i32_1 = arith.constant 0 : i32
    return %arg0, %c0_i32, %c0_i32_0 : i32, i32, i32
  }
}

</mosaic_0001>

<llo_original>
// kernel: discriminator224_forward.3
$region0: #{discriminator224_forward.3}
  #allocation0 [shape = 'u32[]', space=smem, size = 0x4, offset = 0x4, fixed_abs, tag = 'smem constant byte address 0x4 - core index']
  #allocation1 [shape = 'u32[144,128]{1,0:T(1,128)}', space=vmem, size = 0x12000, scoped, tag = 'internal scratch']
  %s0 = inlined_call_operand.vmem [shape: bf16[8,256], index: 0, kind: input, shape index: {}]
  %s1 = inlined_call_operand.vmem [shape: bf16[256,256], index: 1, kind: input, shape index: {}]
  %s2 = inlined_call_operand.vmem [shape: bf16[1,256], index: 2, kind: input, shape index: {}]
  %s3 = inlined_call_operand.vmem [shape: bf16[256,128], index: 3, kind: input, shape index: {}]
  %s4 = inlined_call_operand.vmem [shape: f32[2,8,128], index: 4, kind: output, shape index: {}]
  %s5 = sld [smem:[#allocation0]]
  $region90: #{discriminator224_forward.3} parent=0
    _
  %s7 = ssub.s32 1, %s5
  %s8 = scalar_select 0, %s7, %s5
  $region1: #{discriminator224_forward.3} parent=0
    #allocation2 [shape = 'u8[131072]{0}', space=vmem, size = 0x20000, scoped, tag = 'input window, operand 1']
    loop: start=0, step=1, limit=4
    $region2: #{discriminator224_forward.3} parent=1 // loop_pre_header
      _
    $region3: #{discriminator224_forward.3} parent=1 // loop_header
      %s10 = sphi 0, %s14
      %p11 = scmp.ge.s32.totalorder %s10, 4
      %s18 = sphi 0, %s18
      %s20 = sphi 0, %s18
      %s21 = sphi 0, %s20
      %s35 = sphi 0, %s21
      %s41 = sphi 0, %s43
      %s44 = sphi 0, %s41
      %s45 = sphi 0, %s44
      %s61 = sphi 0, %s45
      %s67 = sphi 0, %s69
      %s70 = sphi 0, %s67
      %s71 = sphi 0, %s70
      %s87 = sphi 0, %s71
      %s93 = sphi 0, %s95
      %s96 = sphi 0, %s93
      %s97 = sphi 0, %s96
      %s113 = sphi 0, %s97
      %s119 = sphi 0, %s121
      %s122 = sphi 0, %s119
      %s123 = sphi 0, %s122
      %s139 = sphi 0, %s123
    $region4: #{discriminator224_forward.3} parent=1 // loop_header_branch
      %13 = sbr.rel (%p11) target = $region8
    $region5: #{discriminator224_forward.3} parent=1 // loop_body
      %s15 = ssub.s32 %s10, 1
      %s16 = ssub.s32 %s10, 2
      %s17 = sadd.s32 %s10, 1
      %s19 = sadd.s32 %s18, 1
      %p22 = scmp.eq.s32.totalorder %s10, 1
      %p23 = scmp.ne.s32.totalorder %s18, %s20
      %p24 = scmp.eq.s32.totalorder %s10, 0
      %p25 = por %p23, %p24
      %p26 = scmp.ne.s32.totalorder %s18, %s20
      %p27 = scmp.eq.s32.totalorder %s15, 1
      %p28 = por %p26, %p27
      %p29 = scmp.ne.s32.totalorder %s20, %s21
      %p30 = scmp.eq.s32.totalorder %s15, 0
      %p31 = por %p29, %p30
      %p32 = scmp.ne.s32.totalorder %s20, %s21
      %p33 = scmp.eq.s32.totalorder %s16, 1
      %p34 = por %p32, %p33
      %p36 = scmp.ne.s32.totalorder %s21, %s35
      %p37 = scmp.eq.s32.totalorder %s16, 0
      %p38 = por %p36, %p37
      %s39 = ssub.s32 %s10, %s17
      %p40 = scmp.eq.s32.totalorder %s39, 0
      %s42 = sadd.s32 %s41, 1
      %s43 = scalar_select %p40, %s41, %s42
      %p46 = pneg %p40
      %p47 = scmp.eq.s32.totalorder %s10, 1
      %p48 = por %p46, %p47
      %p49 = scmp.ne.s32.totalorder %s41, %s44
      %p50 = scmp.eq.s32.totalorder %s10, 0
      %p51 = por %p49, %p50
      %p52 = scmp.ne.s32.totalorder %s41, %s44
      %p53 = scmp.eq.s32.totalorder %s15, 1
      %p54 = por %p52, %p53
      %p55 = scmp.ne.s32.totalorder %s44, %s45
      %p56 = scmp.eq.s32.totalorder %s15, 0
      %p57 = por %p55, %p56
      %p58 = scmp.ne.s32.totalorder %s44, %s45
      %p59 = scmp.eq.s32.totalorder %s16, 1
      %p60 = por %p58, %p59
      %p62 = scmp.ne.s32.totalorder %s45, %s61
      %p63 = scmp.eq.s32.totalorder %s16, 0
      %p64 = por %p62, %p63
      %s65 = ssub.s32 %s10, %s17
      %p66 = scmp.eq.s32.totalorder %s65, 0
      %s68 = sadd.s32 %s67, 1
      %s69 = scalar_select %p66, %s67, %s68
      %p72 = pneg %p66
      %p73 = scmp.eq.s32.totalorder %s10, 1
      %p74 = por %p72, %p73
      %p75 = scmp.ne.s32.totalorder %s67, %s70
      %p76 = scmp.eq.s32.totalorder %s10, 0
      %p77 = por %p75, %p76
      %p78 = scmp.ne.s32.totalorder %s67, %s70
      %p79 = scmp.eq.s32.totalorder %s15, 1
      %p80 = por %p78, %p79
      %p81 = scmp.ne.s32.totalorder %s70, %s71
      %p82 = scmp.eq.s32.totalorder %s15, 0
      %p83 = por %p81, %p82
      %p84 = scmp.ne.s32.totalorder %s70, %s71
      %p85 = scmp.eq.s32.totalorder %s16, 1
      %p86 = por %p84, %p85
      %p88 = scmp.ne.s32.totalorder %s71, %s87
      %p89 = scmp.eq.s32.totalorder %s16, 0
      %p90 = por %p88, %p89
      %s91 = ssub.s32 %s10, %s17
      %p92 = scmp.eq.s32.totalorder %s91, 0
      %s94 = sadd.s32 %s93, 1
      %s95 = scalar_select %p92, %s93, %s94
      %p98 = pneg %p92
      %p99 = scmp.eq.s32.totalorder %s10, 1
      %p100 = por %p98, %p99
      %p101 = scmp.ne.s32.totalorder %s93, %s96
      %p102 = scmp.eq.s32.totalorder %s10, 0
      %p103 = por %p101, %p102
      %p104 = scmp.ne.s32.totalorder %s93, %s96
      %p105 = scmp.eq.s32.totalorder %s15, 1
      %p106 = por %p104, %p105
      %p107 = scmp.ne.s32.totalorder %s96, %s97
      %p108 = scmp.eq.s32.totalorder %s15, 0
      %p109 = por %p107, %p108
      %p110 = scmp.ne.s32.totalorder %s96, %s97
      %p111 = scmp.eq.s32.totalorder %s16, 1
      %p112 = por %p110, %p111
      %p114 = scmp.ne.s32.totalorder %s97, %s113
      %p115 = scmp.eq.s32.totalorder %s16, 0
      %p116 = por %p114, %p115
      %s117 = ssub.s32 %s10, %s17
      %p118 = scmp.eq.s32.totalorder %s117, 0
      %s120 = sadd.s32 %s119, 1
      %s121 = scalar_select %p118, %s119, %s120
      %p124 = pneg %p118
      %p125 = scmp.eq.s32.totalorder %s10, 1
      %p126 = por %p124, %p125
      %p127 = scmp.ne.s32.totalorder %s119, %s122
      %p128 = scmp.eq.s32.totalorder %s10, 0
      %p129 = por %p127, %p128
      %p130 = scmp.ne.s32.totalorder %s119, %s122
      %p131 = scmp.eq.s32.totalorder %s15, 1
      %p132 = por %p130, %p131
      %p133 = scmp.ne.s32.totalorder %s122, %s123
      %p134 = scmp.eq.s32.totalorder %s15, 0
      %p135 = por %p133, %p134
      %p136 = scmp.ne.s32.totalorder %s122, %s123
      %p137 = scmp.eq.s32.totalorder %s16, 1
      %p138 = por %p136, %p137
      %p140 = scmp.ne.s32.totalorder %s123, %s139
      %p141 = scmp.eq.s32.totalorder %s16, 0
      %p142 = por %p140, %p141
      %p143 = scmp.le.s32.totalorder 1, %s10
      %p144 = scmp.lt.s32.totalorder %s10, 3
      %p145 = pnand %p143, %p144
      %p146 = pneg %p145
      // Predicated region
      $region9: #{discriminator224_forward.3} parent=5 // pred_check
        _
      $region10: #{discriminator224_forward.3} parent=5 // pred_check_branch
        %148 = sbr.rel (%p145) target = $region12
      $region11: #{discriminator224_forward.3} parent=5 // pred_region
        %s149 = ssub.s32 %s10, 1
        // Predicated region
        $region13: #{discriminator224_forward.3} parent=11 // pred_check
          %p150 = pneg %p31
        $region14: #{discriminator224_forward.3} parent=11 // pred_check_branch
          %152 = sbr.rel (%p150) target = $region16
        $region15: #{discriminator224_forward.3} parent=11 // pred_region
          _
        $region16: #{discriminator224_forward.3} parent=11 // pred_fallthru
          _
      $region12: #{discriminator224_forward.3} parent=5 // pred_fallthru
        _
      %p153 = scmp.lt.s32.totalorder %s10, 2
      // Predicated region
      $region17: #{discriminator224_forward.3} parent=5 // pred_check
        %p154 = pneg %p153
      $region18: #{discriminator224_forward.3} parent=5 // pred_check_branch
        %156 = sbr.rel (%p154) target = $region20
      $region19: #{discriminator224_forward.3} parent=5 // pred_region
        // Predicated region
        $region21: #{discriminator224_forward.3} parent=19 // pred_check
          %p157 = pneg %p51
        $region22: #{discriminator224_forward.3} parent=19 // pred_check_branch
          %159 = sbr.rel (%p157) target = $region24
        $region23: #{discriminator224_forward.3} parent=19 // pred_region
          %s160 = sand.u32 %s41, 1
          %s161 = sand.u32 %s41, 1
          %s162 = smul.addr %s161, 128
          %s163 = scalar_lea.vmem [#allocation2], %s162
          %s164 = smul.addr %s10, 4
          %s165 = scalar_lea.vmem %s1, %s164
          // Predicated region
          $region25: #{discriminator224_forward.3} parent=23 // pred_check
            _
          $region26: #{discriminator224_forward.3} parent=23 // pred_check_branch
            %167 = sbr.rel (0) target = $region28
          $region27: #{discriminator224_forward.3} parent=23 // pred_region
            // Predicated region
            $region29: #{discriminator224_forward.3} parent=27 // pred_check
              _
            $region30: #{discriminator224_forward.3} parent=27 // pred_check_branch
              %169 = sbr.rel target = $region32
            $region31: #{discriminator224_forward.3} parent=27 // pred_region
              // Predicated region
              $region44: #{discriminator224_forward.3} parent=31 // pred_check
                _
              $region45: #{discriminator224_forward.3} parent=31 // pred_check_branch
                %247 = sbr.rel (0) target = $region47
              $region46: #{discriminator224_forward.3} parent=31 // pred_region
                loop: start=0, step=1, limit=1
                $region48: #{discriminator224_forward.3} parent=46 // loop_pre_header
                  _
                $region49: #{discriminator224_forward.3} parent=46 // loop_header
                  %s249 = sphi 0, %s253
                  %p250 = scmp.ge.s32.totalorder %s249, 1
                  %s254 = sphi %s165, %s165
                  %s255 = sphi %s163, %s163
                $region50: #{discriminator224_forward.3} parent=46 // loop_header_branch
                  %252 = sbr.rel (%p250) target = $region54
                $region51: #{discriminator224_forward.3} parent=46 // loop_body
                  _
                $region52: #{discriminator224_forward.3} parent=46 // loop_footer
                  %s253 = sadd.s32 1, %s249
                $region53: #{discriminator224_forward.3} parent=46 // loop_footer_branch
                  %248 = sbr.rel target = $region49
                $region54: #{discriminator224_forward.3} parent=46 // loop_exit
                  _
                %s257 = ssub.s32 16, 1
                loop: start=0, step=1, limit=1
                $region55: #{discriminator224_forward.3} parent=46 // loop_pre_header
                  _
                $region56: #{discriminator224_forward.3} parent=46 // loop_header
                  %s259 = sphi 0, %s263
                  %p260 = scmp.ge.s32.totalorder %s259, 1
                  %s264 = sphi %s165, %s165
                  %s265 = sphi %s163, %s163
                $region57: #{discriminator224_forward.3} parent=46 // loop_header_branch
                  %262 = sbr.rel (%p260) target = $region61
                $region58: #{discriminator224_forward.3} parent=46 // loop_body
                  %v266 = vld [vmem:[%s264] sm:%s257]
                  %267 = vst [vmem:[%s265] sm:%s257] %v266
                  %v268 = vld [vmem:[%s264 + $0x8] sm:%s257]
                  %269 = vst [vmem:[%s265 + $0x4] sm:%s257] %v268
                  %v270 = vld [vmem:[%s264 + $0x10] sm:%s257]
                  %271 = vst [vmem:[%s265 + $0x8] sm:%s257] %v270
                  %v272 = vld [vmem:[%s264 + $0x18] sm:%s257]
                  %273 = vst [vmem:[%s265 + $0xc] sm:%s257] %v272
                  %v274 = vld [vmem:[%s264 + $0x20] sm:%s257]
                  %275 = vst [vmem:[%s265 + $0x10] sm:%s257] %v274
                  %v276 = vld [vmem:[%s264 + $0x28] sm:%s257]
                  %277 = vst [vmem:[%s265 + $0x14] sm:%s257] %v276
                  %v278 = vld [vmem:[%s264 + $0x30] sm:%s257]
                  %279 = vst [vmem:[%s265 + $0x18] sm:%s257] %v278
                  %v280 = vld [vmem:[%s264 + $0x38] sm:%s257]
                  %281 = vst [vmem:[%s265 + $0x1c] sm:%s257] %v280
                  %v282 = vld [vmem:[%s264 + $0x40] sm:%s257]
                  %283 = vst [vmem:[%s265 + $0x20] sm:%s257] %v282
                  %v284 = vld [vmem:[%s264 + $0x48] sm:%s257]
                  %285 = vst [vmem:[%s265 + $0x24] sm:%s257] %v284
                  %v286 = vld [vmem:[%s264 + $0x50] sm:%s257]
                  %287 = vst [vmem:[%s265 + $0x28] sm:%s257] %v286
                  %v288 = vld [vmem:[%s264 + $0x58] sm:%s257]
                  %289 = vst [vmem:[%s265 + $0x2c] sm:%s257] %v288
                  %v290 = vld [vmem:[%s264 + $0x60] sm:%s257]
                  %291 = vst [vmem:[%s265 + $0x30] sm:%s257] %v290
                  %v292 = vld [vmem:[%s264 + $0x68] sm:%s257]
                  %293 = vst [vmem:[%s265 + $0x34] sm:%s257] %v292
                  %v294 = vld [vmem:[%s264 + $0x70] sm:%s257]
                  %295 = vst [vmem:[%s265 + $0x38] sm:%s257] %v294
                  %v296 = vld [vmem:[%s264 + $0x78] sm:%s257]
                  %297 = vst [vmem:[%s265 + $0x3c] sm:%s257] %v296
                  %v298 = vld [vmem:[%s264 + $0x80] sm:%s257]
                  %299 = vst [vmem:[%s265 + $0x40] sm:%s257] %v298
                  %v300 = vld [vmem:[%s264 + $0x88] sm:%s257]
                  %301 = vst [vmem:[%s265 + $0x44] sm:%s257] %v300
                  %v302 = vld [vmem:[%s264 + $0x90] sm:%s257]
                  %303 = vst [vmem:[%s265 + $0x48] sm:%s257] %v302
                  %v304 = vld [vmem:[%s264 + $0x98] sm:%s257]
                  %305 = vst [vmem:[%s265 + $0x4c] sm:%s257] %v304
                  %v306 = vld [vmem:[%s264 + $0xa0] sm:%s257]
                  %307 = vst [vmem:[%s265 + $0x50] sm:%s257] %v306
                  %v308 = vld [vmem:[%s264 + $0xa8] sm:%s257]
                  %309 = vst [vmem:[%s265 + $0x54] sm:%s257] %v308
                  %v310 = vld [vmem:[%s264 + $0xb0] sm:%s257]
                  %311 = vst [vmem:[%s265 + $0x58] sm:%s257] %v310
                  %v312 = vld [vmem:[%s264 + $0xb8] sm:%s257]
                  %313 = vst [vmem:[%s265 + $0x5c] sm:%s257] %v312
                  %v314 = vld [vmem:[%s264 + $0xc0] sm:%s257]
                  %315 = vst [vmem:[%s265 + $0x60] sm:%s257] %v314
                  %v316 = vld [vmem:[%s264 + $0xc8] sm:%s257]
                  %317 = vst [vmem:[%s265 + $0x64] sm:%s257] %v316
                  %v318 = vld [vmem:[%s264 + $0xd0] sm:%s257]
                  %319 = vst [vmem:[%s265 + $0x68] sm:%s257] %v318
                  %v320 = vld [vmem:[%s264 + $0xd8] sm:%s257]
                  %321 = vst [vmem:[%s265 + $0x6c] sm:%s257] %v320
                  %v322 = vld [vmem:[%s264 + $0xe0] sm:%s257]
                  %323 = vst [vmem:[%s265 + $0x70] sm:%s257] %v322
                  %v324 = vld [vmem:[%s264 + $0xe8] sm:%s257]
                  %325 = vst [vmem:[%s265 + $0x74] sm:%s257] %v324
                  %v326 = vld [vmem:[%s264 + $0xf0] sm:%s257]
                  %327 = vst [vmem:[%s265 + $0x78] sm:%s257] %v326
                  %v328 = vld [vmem:[%s264 + $0xf8] sm:%s257]
                  %329 = vst [vmem:[%s265 + $0x7c] sm:%s257] %v328
                $region59: #{discriminator224_forward.3} parent=46 // loop_footer
                  %s263 = sadd.s32 1, %s259
                $region60: #{discriminator224_forward.3} parent=46 // loop_footer_branch
                  %258 = sbr.rel target = $region56
                $region61: #{discriminator224_forward.3} parent=46 // loop_exit
                  _
              $region47: #{discriminator224_forward.3} parent=31 // pred_fallthru
                _
            $region32: #{discriminator224_forward.3} parent=27 // pred_fallthru
              _
            // Predicated region
            $region33: #{discriminator224_forward.3} parent=27 // pred_check
              _
            $region34: #{discriminator224_forward.3} parent=27 // pred_check_branch
              %171 = sbr.rel (0) target = $region36
            $region35: #{discriminator224_forward.3} parent=27 // pred_region
              %s173 = ssub.s32 16, 1
              loop: start=0, step=1, limit=1
              $region37: #{discriminator224_forward.3} parent=35 // loop_pre_header
                _
              $region38: #{discriminator224_forward.3} parent=35 // loop_header
                %s175 = sphi 0, %s179
                %p176 = scmp.ge.s32.totalorder %s175, 1
                %s180 = sphi %s165, %s165
                %s181 = sphi %s163, %s163
              $region39: #{discriminator224_forward.3} parent=35 // loop_header_branch
                %178 = sbr.rel (%p176) target = $region43
              $region40: #{discriminator224_forward.3} parent=35 // loop_body
                %v182 = vld [vmem:[%s180] sm:%s173]
                %183 = vst [vmem:[%s181] sm:%s173] %v182
                %v184 = vld [vmem:[%s180 + $0x8] sm:%s173]
                %185 = vst [vmem:[%s181 + $0x4] sm:%s173] %v184
                %v186 = vld [vmem:[%s180 + $0x10] sm:%s173]
                %187 = vst [vmem:[%s181 + $0x8] sm:%s173] %v186
                %v188 = vld [vmem:[%s180 + $0x18] sm:%s173]
                %189 = vst [vmem:[%s181 + $0xc] sm:%s173] %v188
                %v190 = vld [vmem:[%s180 + $0x20] sm:%s173]
                %191 = vst [vmem:[%s181 + $0x10] sm:%s173] %v190
                %v192 = vld [vmem:[%s180 + $0x28] sm:%s173]
                %193 = vst [vmem:[%s181 + $0x14] sm:%s173] %v192
                %v194 = vld [vmem:[%s180 + $0x30] sm:%s173]
                %195 = vst [vmem:[%s181 + $0x18] sm:%s173] %v194
                %v196 = vld [vmem:[%s180 + $0x38] sm:%s173]
                %197 = vst [vmem:[%s181 + $0x1c] sm:%s173] %v196
                %v198 = vld [vmem:[%s180 + $0x40] sm:%s173]
                %199 = vst [vmem:[%s181 + $0x20] sm:%s173] %v198
                %v200 = vld [vmem:[%s180 + $0x48] sm:%s173]
                %201 = vst [vmem:[%s181 + $0x24] sm:%s173] %v200
                %v202 = vld [vmem:[%s180 + $0x50] sm:%s173]
                %203 = vst [vmem:[%s181 + $0x28] sm:%s173] %v202
                %v204 = vld [vmem:[%s180 + $0x58] sm:%s173]
                %205 = vst [vmem:[%s181 + $0x2c] sm:%s173] %v204
                %v206 = vld [vmem:[%s180 + $0x60] sm:%s173]
                %207 = vst [vmem:[%s181 + $0x30] sm:%s173] %v206
                %v208 = vld [vmem:[%s180 + $0x68] sm:%s173]
                %209 = vst [vmem:[%s181 + $0x34] sm:%s173] %v208
                %v210 = vld [vmem:[%s180 + $0x70] sm:%s173]
                %211 = vst [vmem:[%s181 + $0x38] sm:%s173] %v210
                %v212 = vld [vmem:[%s180 + $0x78] sm:%s173]
                %213 = vst [vmem:[%s181 + $0x3c] sm:%s173] %v212
                %v214 = vld [vmem:[%s180 + $0x80] sm:%s173]
                %215 = vst [vmem:[%s181 + $0x40] sm:%s173] %v214
                %v216 = vld [vmem:[%s180 + $0x88] sm:%s173]
                %217 = vst [vmem:[%s181 + $0x44] sm:%s173] %v216
                %v218 = vld [vmem:[%s180 + $0x90] sm:%s173]
                %219 = vst [vmem:[%s181 + $0x48] sm:%s173] %v218
                %v220 = vld [vmem:[%s180 + $0x98] sm:%s173]
                %221 = vst [vmem:[%s181 + $0x4c] sm:%s173] %v220
                %v222 = vld [vmem:[%s180 + $0xa0] sm:%s173]
                %223 = vst [vmem:[%s181 + $0x50] sm:%s173] %v222
                %v224 = vld [vmem:[%s180 + $0xa8] sm:%s173]
                %225 = vst [vmem:[%s181 + $0x54] sm:%s173] %v224
                %v226 = vld [vmem:[%s180 + $0xb0] sm:%s173]
                %227 = vst [vmem:[%s181 + $0x58] sm:%s173] %v226
                %v228 = vld [vmem:[%s180 + $0xb8] sm:%s173]
                %229 = vst [vmem:[%s181 + $0x5c] sm:%s173] %v228
                %v230 = vld [vmem:[%s180 + $0xc0] sm:%s173]
                %231 = vst [vmem:[%s181 + $0x60] sm:%s173] %v230
                %v232 = vld [vmem:[%s180 + $0xc8] sm:%s173]
                %233 = vst [vmem:[%s181 + $0x64] sm:%s173] %v232
                %v234 = vld [vmem:[%s180 + $0xd0] sm:%s173]
                %235 = vst [vmem:[%s181 + $0x68] sm:%s173] %v234
                %v236 = vld [vmem:[%s180 + $0xd8] sm:%s173]
                %237 = vst [vmem:[%s181 + $0x6c] sm:%s173] %v236
                %v238 = vld [vmem:[%s180 + $0xe0] sm:%s173]
                %239 = vst [vmem:[%s181 + $0x70] sm:%s173] %v238
                %v240 = vld [vmem:[%s180 + $0xe8] sm:%s173]
                %241 = vst [vmem:[%s181 + $0x74] sm:%s173] %v240
                %v242 = vld [vmem:[%s180 + $0xf0] sm:%s173]
                %243 = vst [vmem:[%s181 + $0x78] sm:%s173] %v242
                %v244 = vld [vmem:[%s180 + $0xf8] sm:%s173]
                %245 = vst [vmem:[%s181 + $0x7c] sm:%s173] %v244
              $region41: #{discriminator224_forward.3} parent=35 // loop_footer
                %s179 = sadd.s32 1, %s175
              $region42: #{discriminator224_forward.3} parent=35 // loop_footer_branch
                %174 = sbr.rel target = $region38
              $region43: #{discriminator224_forward.3} parent=35 // loop_exit
                _
            $region36: #{discriminator224_forward.3} parent=27 // pred_fallthru
              _
          $region28: #{discriminator224_forward.3} parent=23 // pred_fallthru
            _
          %330 = vnop
        $region24: #{discriminator224_forward.3} parent=19 // pred_fallthru
          _
        // Predicated region
        $region62: #{discriminator224_forward.3} parent=19 // pred_check
          %p331 = pneg %p77
        $region63: #{discriminator224_forward.3} parent=19 // pred_check_branch
          %333 = sbr.rel (%p331) target = $region65
        $region64: #{discriminator224_forward.3} parent=19 // pred_region
          %p334 = scmp.lt.s32.totalorder %s10, 1
          %s335 = scalar_select %p334, %s10, 1
          %s336 = scalar_lea.vmem %s2, %s335
        $region65: #{discriminator224_forward.3} parent=19 // pred_fallthru
          _
        // Predicated region
        $region66: #{discriminator224_forward.3} parent=19 // pred_check
          %p337 = pneg %p103
        $region67: #{discriminator224_forward.3} parent=19 // pred_check_branch
          %339 = sbr.rel (%p337) target = $region69
        $region68: #{discriminator224_forward.3} parent=19 // pred_region
          %s340 = smul.u32 16, %s10
          %p341 = scmp.lt.s32.totalorder %s340, 31
          %s342 = scalar_select %p341, %s340, 31
          %s343 = smul.addr %s342, 4
          %s344 = scalar_lea.vmem %s3, %s343
          %s345 = smul.u32 16, %s10
        $region69: #{discriminator224_forward.3} parent=19 // pred_fallthru
          _
      $region20: #{discriminator224_forward.3} parent=5 // pred_fallthru
        _
      %p346 = scmp.le.s32.totalorder 1, %s10
      %p347 = scmp.lt.s32.totalorder %s10, 3
      %p348 = pnand %p346, %p347
      %p349 = pneg %p348
      // Predicated region
      $region70: #{discriminator224_forward.3} parent=5 // pred_check
        _
      $region71: #{discriminator224_forward.3} parent=5 // pred_check_branch
        %351 = sbr.rel (%p348) target = $region73
      $region72: #{discriminator224_forward.3} parent=5 // pred_region
        %s352 = ssub.s32 %s10, 1
        %s353 = sand.u32 %s44, 1
        %s354 = sand.u32 %s44, 1
        %s355 = smul.addr %s354, 128
        %s356 = scalar_lea.vmem [#allocation2], %s355
        // Predicated region
        $region74: #{discriminator224_forward.3} parent=72 // pred_check
          %p357 = pneg %p57
        $region75: #{discriminator224_forward.3} parent=72 // pred_check_branch
          %359 = sbr.rel (%p357) target = $region77
        $region76: #{discriminator224_forward.3} parent=72 // pred_region
          _
        $region77: #{discriminator224_forward.3} parent=72 // pred_fallthru
          _
        %p360 = pneg %p31
        %p361 = pneg %p28
        %s362 = sand.u32 %s44, 1
        %s363 = sand.u32 %s44, 1
        %s364 = smul.addr %s363, 128
        %s365 = scalar_lea.vmem [#allocation2], %s364
        %p366 = pneg %p57
        %p367 = pneg %p54
        %p368 = scmp.lt.s32.totalorder %s15, 1
        %s369 = scalar_select %p368, %s15, 1
        %s370 = scalar_lea.vmem %s2, %s369
        %p371 = pneg %p83
        %p372 = pneg %p80
        %s373 = smul.u32 16, %s15
        %p374 = scmp.lt.s32.totalorder %s373, 31
        %s375 = scalar_select %p374, %s373, 31
        %s376 = smul.addr %s375, 4
        %s377 = scalar_lea.vmem %s3, %s376
        %p378 = pneg %p109
        %p379 = pneg %p106
        %p380 = pneg %p135
        %p381 = pneg %p132
        %p382 = scmp.lt.s32.totalorder %s15, 1
        %s383 = scalar_select %p382, %s15, 1
        %s384 = smul.addr %s383, 8
        %s385 = scalar_lea.vmem %s4, %s384
        %p386 = scmp.lt.s32.totalorder %s15, 1
        %s387 = scalar_select %p386, %s15, 1
        %s388 = scalar_lea.vmem %s2, %s387
        %s389 = smul.u32 16, %s15
        %p390 = scmp.lt.s32.totalorder %s389, 31
        %s391 = scalar_select %p390, %s389, 31
        %s392 = smul.addr %s391, 4
        %s393 = scalar_lea.vmem %s3, %s392
        %s394 = smul.u32 16, %s15
        %p395 = scmp.lt.s32.totalorder %s15, 1
        %s396 = scalar_select %p395, %s15, 1
        %s397 = smul.addr %s396, 8
        %s398 = scalar_lea.vmem %s4, %s397
        %v400 = vld [vmem:[%s0] sm:$0xff]
        %v401 = vld [vmem:[%s356] sm:$0xf]
        %v402 = vld [vmem:[%s356 + $0x4] sm:$0xf]
        %v403 = vld [vmem:[%s356 + $0x8] sm:$0xf]
        %v404 = vld [vmem:[%s356 + $0xc] sm:$0xf]
        %v405 = vld [vmem:[%s356 + $0x10] sm:$0xf]
        %v406 = vld [vmem:[%s356 + $0x14] sm:$0xf]
        %v407 = vld [vmem:[%s356 + $0x18] sm:$0xf]
        %v408 = vld [vmem:[%s356 + $0x1c] sm:$0xf]
        %v409 = vld [vmem:[%s356 + $0x20] sm:$0xf]
        %v410 = vld [vmem:[%s356 + $0x24] sm:$0xf]
        %v411 = vld [vmem:[%s356 + $0x28] sm:$0xf]
        %v412 = vld [vmem:[%s356 + $0x2c] sm:$0xf]
        %v413 = vld [vmem:[%s356 + $0x30] sm:$0xf]
        %v414 = vld [vmem:[%s356 + $0x34] sm:$0xf]
        %v415 = vld [vmem:[%s356 + $0x38] sm:$0xf]
        %v416 = vld [vmem:[%s356 + $0x3c] sm:$0xf]
        %v417 = vld [vmem:[%s356 + $0x40] sm:$0xf]
        %v418 = vld [vmem:[%s356 + $0x44] sm:$0xf]
        %v419 = vld [vmem:[%s356 + $0x48] sm:$0xf]
        %v420 = vld [vmem:[%s356 + $0x4c] sm:$0xf]
        %v421 = vld [vmem:[%s356 + $0x50] sm:$0xf]
        %v422 = vld [vmem:[%s356 + $0x54] sm:$0xf]
        %v423 = vld [vmem:[%s356 + $0x58] sm:$0xf]
        %v424 = vld [vmem:[%s356 + $0x5c] sm:$0xf]
        %v425 = vld [vmem:[%s356 + $0x60] sm:$0xf]
        %v426 = vld [vmem:[%s356 + $0x64] sm:$0xf]
        %v427 = vld [vmem:[%s356 + $0x68] sm:$0xf]
        %v428 = vld [vmem:[%s356 + $0x6c] sm:$0xf]
        %v429 = vld [vmem:[%s356 + $0x70] sm:$0xf]
        %v430 = vld [vmem:[%s356 + $0x74] sm:$0xf]
        %v431 = vld [vmem:[%s356 + $0x78] sm:$0xf]
        %v432 = vld [vmem:[%s356 + $0x7c] sm:$0xf]
        %v433 = vld [vmem:[%s388] sm:$0x1]
        %v434 = vunpack.c.l.bf16 %v433
        %v435 = vlaneseq
        %v436 = vshrl.u32 %v435, 7
        %v437 = vsub.s32 0, %v436
        %v438 = vrot.slane %v434, %v437
        %v440 = vunpack.c.l.b16 %v400
        %v441 = vunpack.c.h.b16 %v400
        %v442 = vpack.c.b16 %v440, %v440
        %v443 = vpack.c.b16 %v441, %v441
        %v478 = vunpack.c.l.b16 %v401
        %v479 = vunpack.c.l.b16 %v402
        %v480 = vunpack.c.l.b16 %v403
        %v481 = vunpack.c.l.b16 %v404
        %v482 = vunpack.c.l.b16 %v405
        %v483 = vunpack.c.l.b16 %v406
        %v484 = vunpack.c.l.b16 %v407
        %v485 = vunpack.c.l.b16 %v408
        %v486 = vunpack.c.l.b16 %v409
        %v487 = vunpack.c.l.b16 %v410
        %v488 = vunpack.c.l.b16 %v411
        %v489 = vunpack.c.l.b16 %v412
        %v490 = vunpack.c.l.b16 %v413
        %v491 = vunpack.c.l.b16 %v414
        %v492 = vunpack.c.l.b16 %v415
        %v493 = vunpack.c.l.b16 %v416
        %v494 = vunpack.c.l.b16 %v417
        %v495 = vunpack.c.l.b16 %v418
        %v496 = vunpack.c.l.b16 %v419
        %v497 = vunpack.c.l.b16 %v420
        %v498 = vunpack.c.l.b16 %v421
        %v499 = vunpack.c.l.b16 %v422
        %v500 = vunpack.c.l.b16 %v423
        %v501 = vunpack.c.l.b16 %v424
        %v502 = vunpack.c.l.b16 %v425
        %v503 = vunpack.c.l.b16 %v426
        %v504 = vunpack.c.l.b16 %v427
        %v505 = vunpack.c.l.b16 %v428
        %v506 = vunpack.c.l.b16 %v429
        %v507 = vunpack.c.l.b16 %v430
        %v508 = vunpack.c.l.b16 %v431
        %v509 = vunpack.c.l.b16 %v432
        %v510 = vpack.c.b16 %v479, %v478
        %v511 = vpack.c.b16 %v481, %v480
        %v512 = vpack.c.b16 %v483, %v482
        %v513 = vpack.c.b16 %v485, %v484
        %v514 = vpack.c.b16 %v487, %v486
        %v515 = vpack.c.b16 %v489, %v488
        %v516 = vpack.c.b16 %v491, %v490
        %v517 = vpack.c.b16 %v493, %v492
        %v518 = vpack.c.b16 %v495, %v494
        %v519 = vpack.c.b16 %v497, %v496
        %v520 = vpack.c.b16 %v499, %v498
        %v521 = vpack.c.b16 %v501, %v500
        %v522 = vpack.c.b16 %v503, %v502
        %v523 = vpack.c.b16 %v505, %v504
        %v524 = vpack.c.b16 %v507, %v506
        %v525 = vpack.c.b16 %v509, %v508
        %542 = vmatprep.subr.bf16.mxu0 0
        %543 = vmatpush1.bf16.msra.mxu0 %v517
        %544 = vmatprep.subr.bf16.mxu0 0
        %545 = vmatpush1.bf16.msra.mxu0 %v516
        %546 = vmatprep.subr.bf16.mxu0 0
        %547 = vmatpush1.bf16.msra.mxu0 %v515
        %548 = vmatprep.subr.bf16.mxu0 0
        %549 = vmatpush1.bf16.msra.mxu0 %v514
        %550 = vmatprep.subr.bf16.mxu0 0
        %551 = vmatpush1.bf16.msra.mxu0 %v513
        %552 = vmatprep.subr.bf16.mxu0 0
        %553 = vmatpush1.bf16.msra.mxu0 %v512
        %554 = vmatprep.subr.bf16.mxu0 0
        %555 = vmatpush1.bf16.msra.mxu0 %v511
        %556 = vmatprep.subr.bf16.mxu0 0
        %557 = vmatpush1.bf16.msra.mxu0 %v510
        %558 = vmatprep.subr.bf16.mxu0 0
        %559 = vmatpush2.bf16.msra.mxu0 %v525
        %560 = vmatprep.subr.bf16.mxu0 0
        %561 = vmatpush2.bf16.msra.mxu0 %v524
        %562 = vmatprep.subr.bf16.mxu0 0
        %563 = vmatpush2.bf16.msra.mxu0 %v523
        %564 = vmatprep.subr.bf16.mxu0 0
        %565 = vmatpush2.bf16.msra.mxu0 %v522
        %566 = vmatprep.subr.bf16.mxu0 0
        %567 = vmatpush2.bf16.msra.mxu0 %v521
        %568 = vmatprep.subr.bf16.mxu0 0
        %569 = vmatpush2.bf16.msra.mxu0 %v520
        %570 = vmatprep.subr.bf16.mxu0 0
        %571 = vmatpush2.bf16.msra.mxu0 %v519
        %572 = vmatprep.subr.bf16.mxu0 0
        %573 = vmatpush2.bf16.msra.mxu0 %v518
        %574 = vmatprep.mubr.bf16.mxu0 %v443
        %575 = vmatmul.mubr.bf16.gmra.mxu0 %v442
        %v576 = vpop.f32.mrf.mxu0
        %v577 = vadd.f32 %v438, %v576
        %v578 = vpop.f32.mrf.mxu0
        %v579 = vpop.f32.mrf.mxu0
        %v580 = vpop.f32.mrf.mxu0
        %581 = vdwg.mxu0
        %v582 = vmax.f32 %v577, 0.0
        %v583 = vpack.c.bf16 %v582, %v582
        %v584 = vld [vmem:[%s393] sm:$0xf]
        %v585 = vld [vmem:[%s393 + $0x4] sm:$0xf]
        %v586 = vld [vmem:[%s393 + $0x8] sm:$0xf]
        %v587 = vld [vmem:[%s393 + $0xc] sm:$0xf]
        %v588 = vld [vmem:[%s393 + $0x10] sm:$0xf]
        %v589 = vld [vmem:[%s393 + $0x14] sm:$0xf]
        %v590 = vld [vmem:[%s393 + $0x18] sm:$0xf]
        %v591 = vld [vmem:[%s393 + $0x1c] sm:$0xf]
        %v592 = vld [vmem:[%s393 + $0x20] sm:$0xf]
        %v593 = vld [vmem:[%s393 + $0x24] sm:$0xf]
        %v594 = vld [vmem:[%s393 + $0x28] sm:$0xf]
        %v595 = vld [vmem:[%s393 + $0x2c] sm:$0xf]
        %v596 = vld [vmem:[%s393 + $0x30] sm:$0xf]
        %v597 = vld [vmem:[%s393 + $0x34] sm:$0xf]
        %v598 = vld [vmem:[%s393 + $0x38] sm:$0xf]
        %v599 = vld [vmem:[%s393 + $0x3c] sm:$0xf]
        %v616 = vunpack.c.l.b16 %v584
        %v617 = vunpack.c.l.b16 %v585
        %v618 = vunpack.c.l.b16 %v586
        %v619 = vunpack.c.l.b16 %v587
        %v620 = vunpack.c.l.b16 %v588
        %v621 = vunpack.c.l.b16 %v589
        %v622 = vunpack.c.l.b16 %v590
        %v623 = vunpack.c.l.b16 %v591
        %v624 = vunpack.c.l.b16 %v592
        %v625 = vunpack.c.l.b16 %v593
        %v626 = vunpack.c.l.b16 %v594
        %v627 = vunpack.c.l.b16 %v595
        %v628 = vunpack.c.l.b16 %v596
        %v629 = vunpack.c.l.b16 %v597
        %v630 = vunpack.c.l.b16 %v598
        %v631 = vunpack.c.l.b16 %v599
        %v632 = vpack.c.b16 %v617, %v616
        %v633 = vpack.c.b16 %v619, %v618
        %v634 = vpack.c.b16 %v621, %v620
        %v635 = vpack.c.b16 %v623, %v622
        %v636 = vpack.c.b16 %v625, %v624
        %v637 = vpack.c.b16 %v627, %v626
        %v638 = vpack.c.b16 %v629, %v628
        %v639 = vpack.c.b16 %v631, %v630
        %648 = vmatprep.subr.bf16.mxu0 0
        %649 = vmatpush1.bf16.msra.mxu0 %v639
        %650 = vmatprep.subr.bf16.mxu0 0
        %651 = vmatpush1.bf16.msra.mxu0 %v638
        %652 = vmatprep.subr.bf16.mxu0 0
        %653 = vmatpush1.bf16.msra.mxu0 %v637
        %654 = vmatprep.subr.bf16.mxu0 0
        %655 = vmatpush1.bf16.msra.mxu0 %v636
        %656 = vmatprep.subr.bf16.mxu0 0
        %657 = vmatpush1.bf16.msra.mxu0 %v635
        %658 = vmatprep.subr.bf16.mxu0 0
        %659 = vmatpush1.bf16.msra.mxu0 %v634
        %660 = vmatprep.subr.bf16.mxu0 0
        %661 = vmatpush1.bf16.msra.mxu0 %v633
        %662 = vmatprep.subr.bf16.mxu0 0
        %663 = vmatpush1.bf16.msra.mxu0 %v632
        %664 = vmatprep.subr.bf16.mxu0 0
        %665 = vmatpush2.bf16.msra.mxu0 0
        %666 = vmatprep.subr.bf16.mxu0 0
        %667 = vmatpush2.bf16.msra.mxu0 0
        %668 = vmatprep.subr.bf16.mxu0 0
        %669 = vmatpush2.bf16.msra.mxu0 0
        %670 = vmatprep.subr.bf16.mxu0 0
        %671 = vmatpush2.bf16.msra.mxu0 0
        %672 = vmatprep.subr.bf16.mxu0 0
        %673 = vmatpush2.bf16.msra.mxu0 0
        %674 = vmatprep.subr.bf16.mxu0 0
        %675 = vmatpush2.bf16.msra.mxu0 0
        %676 = vmatprep.subr.bf16.mxu0 0
        %677 = vmatpush2.bf16.msra.mxu0 0
        %678 = vmatprep.subr.bf16.mxu0 0
        %679 = vmatpush2.bf16.msra.mxu0 0
        %680 = vmatprep.mubr.bf16.mxu0 0
        %681 = vmatmul.mubr.bf16.gmra.mxu0 %v583
        %v682 = vpop.f32.mrf.mxu0
        %v683 = vadd.f32 0.0, %v682
        %v684 = vpop.f32.mrf.mxu0
        %v685 = vpop.f32.mrf.mxu0
        %v686 = vpop.f32.mrf.mxu0
        %687 = vdwg.mxu0
        %688 = vst [vmem:[%s398] sm:$0xff] %v683
        %p689 = scmp.lt.s32.totalorder %s15, 1
        %s690 = scalar_select %p689, %s15, 1
        %s691 = smul.addr %s690, 8
        %s692 = scalar_lea.vmem %s4, %s691
        // Predicated region
        $region78: #{discriminator224_forward.3} parent=72 // pred_check
          %p693 = pneg %p132
        $region79: #{discriminator224_forward.3} parent=72 // pred_check_branch
          %695 = sbr.rel (%p693) target = $region81
        $region80: #{discriminator224_forward.3} parent=72 // pred_region
          _
        $region81: #{discriminator224_forward.3} parent=72 // pred_fallthru
          _
      $region73: #{discriminator224_forward.3} parent=5 // pred_fallthru
        _
      %p696 = scmp.le.s32.totalorder 2, %s10
      // Predicated region
      $region82: #{discriminator224_forward.3} parent=5 // pred_check
        %p697 = pneg %p696
      $region83: #{discriminator224_forward.3} parent=5 // pred_check_branch
        %699 = sbr.rel (%p697) target = $region85
      $region84: #{discriminator224_forward.3} parent=5 // pred_region
        %s700 = ssub.s32 %s10, 2
        // Predicated region
        $region86: #{discriminator224_forward.3} parent=84 // pred_check
          %p701 = pneg %p138
        $region87: #{discriminator224_forward.3} parent=84 // pred_check_branch
          %703 = sbr.rel (%p701) target = $region89
        $region88: #{discriminator224_forward.3} parent=84 // pred_region
          %p704 = scmp.lt.s32.totalorder %s16, 1
          %s705 = scalar_select %p704, %s16, 1
          %s706 = smul.addr %s705, 8
          %s707 = scalar_lea.vmem %s4, %s706
        $region89: #{discriminator224_forward.3} parent=84 // pred_fallthru
          _
      $region85: #{discriminator224_forward.3} parent=5 // pred_fallthru
        _
    $region6: #{discriminator224_forward.3} parent=1 // loop_footer
      %s14 = sadd.s32 1, %s10
    $region7: #{discriminator224_forward.3} parent=1 // loop_footer_branch
      %9 = sbr.rel target = $region3
    $region8: #{discriminator224_forward.3} parent=1 // loop_exit
      _

// kernel: discriminator224_forward.2
$region0: #{discriminator224_forward.2}
  #allocation0 [shape = 'u32[]', space=smem, size = 0x4, offset = 0x4, fixed_abs, tag = 'smem constant byte address 0x4 - core index']
  #allocation1 [shape = 'u32[144,128]{1,0:T(1,128)}', space=vmem, size = 0x12000, scoped, tag = 'internal scratch']
  %s0 = inlined_call_operand.vmem [shape: bf16[8,384], index: 0, kind: input, shape index: {}]
  %s1 = inlined_call_operand.vmem [shape: bf16[384,256], index: 1, kind: input, shape index: {}]
  %s2 = inlined_call_operand.vmem [shape: bf16[1,256], index: 2, kind: input, shape index: {}]
  %s3 = inlined_call_operand.vmem [shape: bf16[8,256], index: 3, kind: output, shape index: {}]
  %s4 = sld [smem:[#allocation0]]
  $region86: #{discriminator224_forward.2} parent=0
    _
  %s6 = ssub.s32 1, %s4
  %s7 = scalar_select 0, %s6, %s4
  $region1: #{discriminator224_forward.2} parent=0
    #allocation2 [shape = 'u8[196608]{0}', space=vmem, size = 0x30000, scoped, tag = 'input window, operand 1']
    loop: start=0, step=1, limit=4
    $region2: #{discriminator224_forward.2} parent=1 // loop_pre_header
      _
    $region3: #{discriminator224_forward.2} parent=1 // loop_header
      %s9 = sphi 0, %s13
      %p10 = scmp.ge.s32.totalorder %s9, 4
      %s17 = sphi 0, %s17
      %s19 = sphi 0, %s17
      %s20 = sphi 0, %s19
      %s34 = sphi 0, %s20
      %s40 = sphi 0, %s42
      %s43 = sphi 0, %s40
      %s44 = sphi 0, %s43
      %s60 = sphi 0, %s44
      %s66 = sphi 0, %s68
      %s69 = sphi 0, %s66
      %s70 = sphi 0, %s69
      %s86 = sphi 0, %s70
      %s92 = sphi 0, %s94
      %s95 = sphi 0, %s92
      %s96 = sphi 0, %s95
      %s112 = sphi 0, %s96
    $region4: #{discriminator224_forward.2} parent=1 // loop_header_branch
      %12 = sbr.rel (%p10) target = $region8
    $region5: #{discriminator224_forward.2} parent=1 // loop_body
      %s14 = ssub.s32 %s9, 1
      %s15 = ssub.s32 %s9, 2
      %s16 = sadd.s32 %s9, 1
      %s18 = sadd.s32 %s17, 1
      %p21 = scmp.eq.s32.totalorder %s9, 1
      %p22 = scmp.ne.s32.totalorder %s17, %s19
      %p23 = scmp.eq.s32.totalorder %s9, 0
      %p24 = por %p22, %p23
      %p25 = scmp.ne.s32.totalorder %s17, %s19
      %p26 = scmp.eq.s32.totalorder %s14, 1
      %p27 = por %p25, %p26
      %p28 = scmp.ne.s32.totalorder %s19, %s20
      %p29 = scmp.eq.s32.totalorder %s14, 0
      %p30 = por %p28, %p29
      %p31 = scmp.ne.s32.totalorder %s19, %s20
      %p32 = scmp.eq.s32.totalorder %s15, 1
      %p33 = por %p31, %p32
      %p35 = scmp.ne.s32.totalorder %s20, %s34
      %p36 = scmp.eq.s32.totalorder %s15, 0
      %p37 = por %p35, %p36
      %s38 = ssub.s32 %s9, %s16
      %p39 = scmp.eq.s32.totalorder %s38, 0
      %s41 = sadd.s32 %s40, 1
      %s42 = scalar_select %p39, %s40, %s41
      %p45 = pneg %p39
      %p46 = scmp.eq.s32.totalorder %s9, 1
      %p47 = por %p45, %p46
      %p48 = scmp.ne.s32.totalorder %s40, %s43
      %p49 = scmp.eq.s32.totalorder %s9, 0
      %p50 = por %p48, %p49
      %p51 = scmp.ne.s32.totalorder %s40, %s43
      %p52 = scmp.eq.s32.totalorder %s14, 1
      %p53 = por %p51, %p52
      %p54 = scmp.ne.s32.totalorder %s43, %s44
      %p55 = scmp.eq.s32.totalorder %s14, 0
      %p56 = por %p54, %p55
      %p57 = scmp.ne.s32.totalorder %s43, %s44
      %p58 = scmp.eq.s32.totalorder %s15, 1
      %p59 = por %p57, %p58
      %p61 = scmp.ne.s32.totalorder %s44, %s60
      %p62 = scmp.eq.s32.totalorder %s15, 0
      %p63 = por %p61, %p62
      %s64 = ssub.s32 %s9, %s16
      %p65 = scmp.eq.s32.totalorder %s64, 0
      %s67 = sadd.s32 %s66, 1
      %s68 = scalar_select %p65, %s66, %s67
      %p71 = pneg %p65
      %p72 = scmp.eq.s32.totalorder %s9, 1
      %p73 = por %p71, %p72
      %p74 = scmp.ne.s32.totalorder %s66, %s69
      %p75 = scmp.eq.s32.totalorder %s9, 0
      %p76 = por %p74, %p75
      %p77 = scmp.ne.s32.totalorder %s66, %s69
      %p78 = scmp.eq.s32.totalorder %s14, 1
      %p79 = por %p77, %p78
      %p80 = scmp.ne.s32.totalorder %s69, %s70
      %p81 = scmp.eq.s32.totalorder %s14, 0
      %p82 = por %p80, %p81
      %p83 = scmp.ne.s32.totalorder %s69, %s70
      %p84 = scmp.eq.s32.totalorder %s15, 1
      %p85 = por %p83, %p84
      %p87 = scmp.ne.s32.totalorder %s70, %s86
      %p88 = scmp.eq.s32.totalorder %s15, 0
      %p89 = por %p87, %p88
      %s90 = ssub.s32 %s9, %s16
      %p91 = scmp.eq.s32.totalorder %s90, 0
      %s93 = sadd.s32 %s92, 1
      %s94 = scalar_select %p91, %s92, %s93
      %p97 = pneg %p91
      %p98 = scmp.eq.s32.totalorder %s9, 1
      %p99 = por %p97, %p98
      %p100 = scmp.ne.s32.totalorder %s92, %s95
      %p101 = scmp.eq.s32.totalorder %s9, 0
      %p102 = por %p100, %p101
      %p103 = scmp.ne.s32.totalorder %s92, %s95
      %p104 = scmp.eq.s32.totalorder %s14, 1
      %p105 = por %p103, %p104
      %p106 = scmp.ne.s32.totalorder %s95, %s96
      %p107 = scmp.eq.s32.totalorder %s14, 0
      %p108 = por %p106, %p107
      %p109 = scmp.ne.s32.totalorder %s95, %s96
      %p110 = scmp.eq.s32.totalorder %s15, 1
      %p111 = por %p109, %p110
      %p113 = scmp.ne.s32.totalorder %s96, %s112
      %p114 = scmp.eq.s32.totalorder %s15, 0
      %p115 = por %p113, %p114
      %p116 = scmp.le.s32.totalorder 1, %s9
      %p117 = scmp.lt.s32.totalorder %s9, 3
      %p118 = pnand %p116, %p117
      %p119 = pneg %p118
      // Predicated region
      $region9: #{discriminator224_forward.2} parent=5 // pred_check
        _
      $region10: #{discriminator224_forward.2} parent=5 // pred_check_branch
        %121 = sbr.rel (%p118) target = $region12
      $region11: #{discriminator224_forward.2} parent=5 // pred_region
        %s122 = ssub.s32 %s9, 1
        // Predicated region
        $region13: #{discriminator224_forward.2} parent=11 // pred_check
          %p123 = pneg %p30
        $region14: #{discriminator224_forward.2} parent=11 // pred_check_branch
          %125 = sbr.rel (%p123) target = $region16
        $region15: #{discriminator224_forward.2} parent=11 // pred_region
          _
        $region16: #{discriminator224_forward.2} parent=11 // pred_fallthru
          _
      $region12: #{discriminator224_forward.2} parent=5 // pred_fallthru
        _
      %p126 = scmp.lt.s32.totalorder %s9, 2
      // Predicated region
      $region17: #{discriminator224_forward.2} parent=5 // pred_check
        %p127 = pneg %p126
      $region18: #{discriminator224_forward.2} parent=5 // pred_check_branch
        %129 = sbr.rel (%p127) target = $region20
      $region19: #{discriminator224_forward.2} parent=5 // pred_region
        // Predicated region
        $region21: #{discriminator224_forward.2} parent=19 // pred_check
          %p130 = pneg %p50
        $region22: #{discriminator224_forward.2} parent=19 // pred_check_branch
          %132 = sbr.rel (%p130) target = $region24
        $region23: #{discriminator224_forward.2} parent=19 // pred_region
          %s133 = sand.u32 %s40, 1
          %s134 = sand.u32 %s40, 1
          %s135 = smul.addr %s134, 192
          %s136 = scalar_lea.vmem [#allocation2], %s135
          %s137 = smul.addr %s9, 4
          %s138 = scalar_lea.vmem %s1, %s137
          // Predicated region
          $region25: #{discriminator224_forward.2} parent=23 // pred_check
            _
          $region26: #{discriminator224_forward.2} parent=23 // pred_check_branch
            %140 = sbr.rel (0) target = $region28
          $region27: #{discriminator224_forward.2} parent=23 // pred_region
            // Predicated region
            $region29: #{discriminator224_forward.2} parent=27 // pred_check
              _
            $region30: #{discriminator224_forward.2} parent=27 // pred_check_branch
              %142 = sbr.rel target = $region32
            $region31: #{discriminator224_forward.2} parent=27 // pred_region
              // Predicated region
              $region44: #{discriminator224_forward.2} parent=31 // pred_check
                _
              $region45: #{discriminator224_forward.2} parent=31 // pred_check_branch
                %252 = sbr.rel (0) target = $region47
              $region46: #{discriminator224_forward.2} parent=31 // pred_region
                loop: start=0, step=1, limit=1
                $region48: #{discriminator224_forward.2} parent=46 // loop_pre_header
                  _
                $region49: #{discriminator224_forward.2} parent=46 // loop_header
                  %s254 = sphi 0, %s258
                  %p255 = scmp.ge.s32.totalorder %s254, 1
                  %s259 = sphi %s138, %s138
                  %s260 = sphi %s136, %s136
                $region50: #{discriminator224_forward.2} parent=46 // loop_header_branch
                  %257 = sbr.rel (%p255) target = $region54
                $region51: #{discriminator224_forward.2} parent=46 // loop_body
                  _
                $region52: #{discriminator224_forward.2} parent=46 // loop_footer
                  %s258 = sadd.s32 1, %s254
                $region53: #{discriminator224_forward.2} parent=46 // loop_footer_branch
                  %253 = sbr.rel target = $region49
                $region54: #{discriminator224_forward.2} parent=46 // loop_exit
                  _
                %s262 = ssub.s32 16, 1
                loop: start=0, step=1, limit=1
                $region55: #{discriminator224_forward.2} parent=46 // loop_pre_header
                  _
                $region56: #{discriminator224_forward.2} parent=46 // loop_header
                  %s264 = sphi 0, %s268
                  %p265 = scmp.ge.s32.totalorder %s264, 1
                  %s269 = sphi %s138, %s138
                  %s270 = sphi %s136, %s136
                $region57: #{discriminator224_forward.2} parent=46 // loop_header_branch
                  %267 = sbr.rel (%p265) target = $region61
                $region58: #{discriminator224_forward.2} parent=46 // loop_body
                  %v271 = vld [vmem:[%s269] sm:%s262]
                  %272 = vst [vmem:[%s270] sm:%s262] %v271
                  %v273 = vld [vmem:[%s269 + $0x8] sm:%s262]
                  %274 = vst [vmem:[%s270 + $0x4] sm:%s262] %v273
                  %v275 = vld [vmem:[%s269 + $0x10] sm:%s262]
                  %276 = vst [vmem:[%s270 + $0x8] sm:%s262] %v275
                  %v277 = vld [vmem:[%s269 + $0x18] sm:%s262]
                  %278 = vst [vmem:[%s270 + $0xc] sm:%s262] %v277
                  %v279 = vld [vmem:[%s269 + $0x20] sm:%s262]
                  %280 = vst [vmem:[%s270 + $0x10] sm:%s262] %v279
                  %v281 = vld [vmem:[%s269 + $0x28] sm:%s262]
                  %282 = vst [vmem:[%s270 + $0x14] sm:%s262] %v281
                  %v283 = vld [vmem:[%s269 + $0x30] sm:%s262]
                  %284 = vst [vmem:[%s270 + $0x18] sm:%s262] %v283
                  %v285 = vld [vmem:[%s269 + $0x38] sm:%s262]
                  %286 = vst [vmem:[%s270 + $0x1c] sm:%s262] %v285
                  %v287 = vld [vmem:[%s269 + $0x40] sm:%s262]
                  %288 = vst [vmem:[%s270 + $0x20] sm:%s262] %v287
                  %v289 = vld [vmem:[%s269 + $0x48] sm:%s262]
                  %290 = vst [vmem:[%s270 + $0x24] sm:%s262] %v289
                  %v291 = vld [vmem:[%s269 + $0x50] sm:%s262]
                  %292 = vst [vmem:[%s270 + $0x28] sm:%s262] %v291
                  %v293 = vld [vmem:[%s269 + $0x58] sm:%s262]
                  %294 = vst [vmem:[%s270 + $0x2c] sm:%s262] %v293
                  %v295 = vld [vmem:[%s269 + $0x60] sm:%s262]
                  %296 = vst [vmem:[%s270 + $0x30] sm:%s262] %v295
                  %v297 = vld [vmem:[%s269 + $0x68] sm:%s262]
                  %298 = vst [vmem:[%s270 + $0x34] sm:%s262] %v297
                  %v299 = vld [vmem:[%s269 + $0x70] sm:%s262]
                  %300 = vst [vmem:[%s270 + $0x38] sm:%s262] %v299
                  %v301 = vld [vmem:[%s269 + $0x78] sm:%s262]
                  %302 = vst [vmem:[%s270 + $0x3c] sm:%s262] %v301
                  %v303 = vld [vmem:[%s269 + $0x80] sm:%s262]
                  %304 = vst [vmem:[%s270 + $0x40] sm:%s262] %v303
                  %v305 = vld [vmem:[%s269 + $0x88] sm:%s262]
                  %306 = vst [vmem:[%s270 + $0x44] sm:%s262] %v305
                  %v307 = vld [vmem:[%s269 + $0x90] sm:%s262]
                  %308 = vst [vmem:[%s270 + $0x48] sm:%s262] %v307
                  %v309 = vld [vmem:[%s269 + $0x98] sm:%s262]
                  %310 = vst [vmem:[%s270 + $0x4c] sm:%s262] %v309
                  %v311 = vld [vmem:[%s269 + $0xa0] sm:%s262]
                  %312 = vst [vmem:[%s270 + $0x50] sm:%s262] %v311
                  %v313 = vld [vmem:[%s269 + $0xa8] sm:%s262]
                  %314 = vst [vmem:[%s270 + $0x54] sm:%s262] %v313
                  %v315 = vld [vmem:[%s269 + $0xb0] sm:%s262]
                  %316 = vst [vmem:[%s270 + $0x58] sm:%s262] %v315
                  %v317 = vld [vmem:[%s269 + $0xb8] sm:%s262]
                  %318 = vst [vmem:[%s270 + $0x5c] sm:%s262] %v317
                  %v319 = vld [vmem:[%s269 + $0xc0] sm:%s262]
                  %320 = vst [vmem:[%s270 + $0x60] sm:%s262] %v319
                  %v321 = vld [vmem:[%s269 + $0xc8] sm:%s262]
                  %322 = vst [vmem:[%s270 + $0x64] sm:%s262] %v321
                  %v323 = vld [vmem:[%s269 + $0xd0] sm:%s262]
                  %324 = vst [vmem:[%s270 + $0x68] sm:%s262] %v323
                  %v325 = vld [vmem:[%s269 + $0xd8] sm:%s262]
                  %326 = vst [vmem:[%s270 + $0x6c] sm:%s262] %v325
                  %v327 = vld [vmem:[%s269 + $0xe0] sm:%s262]
                  %328 = vst [vmem:[%s270 + $0x70] sm:%s262] %v327
                  %v329 = vld [vmem:[%s269 + $0xe8] sm:%s262]
                  %330 = vst [vmem:[%s270 + $0x74] sm:%s262] %v329
                  %v331 = vld [vmem:[%s269 + $0xf0] sm:%s262]
                  %332 = vst [vmem:[%s270 + $0x78] sm:%s262] %v331
                  %v333 = vld [vmem:[%s269 + $0xf8] sm:%s262]
                  %334 = vst [vmem:[%s270 + $0x7c] sm:%s262] %v333
                  %v335 = vld [vmem:[%s269 + $0x100] sm:%s262]
                  %336 = vst [vmem:[%s270 + $0x80] sm:%s262] %v335
                  %v337 = vld [vmem:[%s269 + $0x108] sm:%s262]
                  %338 = vst [vmem:[%s270 + $0x84] sm:%s262] %v337
                  %v339 = vld [vmem:[%s269 + $0x110] sm:%s262]
                  %340 = vst [vmem:[%s270 + $0x88] sm:%s262] %v339
                  %v341 = vld [vmem:[%s269 + $0x118] sm:%s262]
                  %342 = vst [vmem:[%s270 + $0x8c] sm:%s262] %v341
                  %v343 = vld [vmem:[%s269 + $0x120] sm:%s262]
                  %344 = vst [vmem:[%s270 + $0x90] sm:%s262] %v343
                  %v345 = vld [vmem:[%s269 + $0x128] sm:%s262]
                  %346 = vst [vmem:[%s270 + $0x94] sm:%s262] %v345
                  %v347 = vld [vmem:[%s269 + $0x130] sm:%s262]
                  %348 = vst [vmem:[%s270 + $0x98] sm:%s262] %v347
                  %v349 = vld [vmem:[%s269 + $0x138] sm:%s262]
                  %350 = vst [vmem:[%s270 + $0x9c] sm:%s262] %v349
                  %v351 = vld [vmem:[%s269 + $0x140] sm:%s262]
                  %352 = vst [vmem:[%s270 + $0xa0] sm:%s262] %v351
                  %v353 = vld [vmem:[%s269 + $0x148] sm:%s262]
                  %354 = vst [vmem:[%s270 + $0xa4] sm:%s262] %v353
                  %v355 = vld [vmem:[%s269 + $0x150] sm:%s262]
                  %356 = vst [vmem:[%s270 + $0xa8] sm:%s262] %v355
                  %v357 = vld [vmem:[%s269 + $0x158] sm:%s262]
                  %358 = vst [vmem:[%s270 + $0xac] sm:%s262] %v357
                  %v359 = vld [vmem:[%s269 + $0x160] sm:%s262]
                  %360 = vst [vmem:[%s270 + $0xb0] sm:%s262] %v359
                  %v361 = vld [vmem:[%s269 + $0x168] sm:%s262]
                  %362 = vst [vmem:[%s270 + $0xb4] sm:%s262] %v361
                  %v363 = vld [vmem:[%s269 + $0x170] sm:%s262]
                  %364 = vst [vmem:[%s270 + $0xb8] sm:%s262] %v363
                  %v365 = vld [vmem:[%s269 + $0x178] sm:%s262]
                  %366 = vst [vmem:[%s270 + $0xbc] sm:%s262] %v365
                $region59: #{discriminator224_forward.2} parent=46 // loop_footer
                  %s268 = sadd.s32 1, %s264
                $region60: #{discriminator224_forward.2} parent=46 // loop_footer_branch
                  %263 = sbr.rel target = $region56
                $region61: #{discriminator224_forward.2} parent=46 // loop_exit
                  _
              $region47: #{discriminator224_forward.2} parent=31 // pred_fallthru
                _
            $region32: #{discriminator224_forward.2} parent=27 // pred_fallthru
              _
            // Predicated region
            $region33: #{discriminator224_forward.2} parent=27 // pred_check
              _
            $region34: #{discriminator224_forward.2} parent=27 // pred_check_branch
              %144 = sbr.rel (0) target = $region36
            $region35: #{discriminator224_forward.2} parent=27 // pred_region
              %s146 = ssub.s32 16, 1
              loop: start=0, step=1, limit=1
              $region37: #{discriminator224_forward.2} parent=35 // loop_pre_header
                _
              $region38: #{discriminator224_forward.2} parent=35 // loop_header
                %s148 = sphi 0, %s152
                %p149 = scmp.ge.s32.totalorder %s148, 1
                %s153 = sphi %s138, %s138
                %s154 = sphi %s136, %s136
              $region39: #{discriminator224_forward.2} parent=35 // loop_header_branch
                %151 = sbr.rel (%p149) target = $region43
              $region40: #{discriminator224_forward.2} parent=35 // loop_body
                %v155 = vld [vmem:[%s153] sm:%s146]
                %156 = vst [vmem:[%s154] sm:%s146] %v155
                %v157 = vld [vmem:[%s153 + $0x8] sm:%s146]
                %158 = vst [vmem:[%s154 + $0x4] sm:%s146] %v157
                %v159 = vld [vmem:[%s153 + $0x10] sm:%s146]
                %160 = vst [vmem:[%s154 + $0x8] sm:%s146] %v159
                %v161 = vld [vmem:[%s153 + $0x18] sm:%s146]
                %162 = vst [vmem:[%s154 + $0xc] sm:%s146] %v161
                %v163 = vld [vmem:[%s153 + $0x20] sm:%s146]
                %164 = vst [vmem:[%s154 + $0x10] sm:%s146] %v163
                %v165 = vld [vmem:[%s153 + $0x28] sm:%s146]
                %166 = vst [vmem:[%s154 + $0x14] sm:%s146] %v165
                %v167 = vld [vmem:[%s153 + $0x30] sm:%s146]
                %168 = vst [vmem:[%s154 + $0x18] sm:%s146] %v167
                %v169 = vld [vmem:[%s153 + $0x38] sm:%s146]
                %170 = vst [vmem:[%s154 + $0x1c] sm:%s146] %v169
                %v171 = vld [vmem:[%s153 + $0x40] sm:%s146]
                %172 = vst [vmem:[%s154 + $0x20] sm:%s146] %v171
                %v173 = vld [vmem:[%s153 + $0x48] sm:%s146]
                %174 = vst [vmem:[%s154 + $0x24] sm:%s146] %v173
                %v175 = vld [vmem:[%s153 + $0x50] sm:%s146]
                %176 = vst [vmem:[%s154 + $0x28] sm:%s146] %v175
                %v177 = vld [vmem:[%s153 + $0x58] sm:%s146]
                %178 = vst [vmem:[%s154 + $0x2c] sm:%s146] %v177
                %v179 = vld [vmem:[%s153 + $0x60] sm:%s146]
                %180 = vst [vmem:[%s154 + $0x30] sm:%s146] %v179
                %v181 = vld [vmem:[%s153 + $0x68] sm:%s146]
                %182 = vst [vmem:[%s154 + $0x34] sm:%s146] %v181
                %v183 = vld [vmem:[%s153 + $0x70] sm:%s146]
                %184 = vst [vmem:[%s154 + $0x38] sm:%s146] %v183
                %v185 = vld [vmem:[%s153 + $0x78] sm:%s146]
                %186 = vst [vmem:[%s154 + $0x3c] sm:%s146] %v185
                %v187 = vld [vmem:[%s153 + $0x80] sm:%s146]
                %188 = vst [vmem:[%s154 + $0x40] sm:%s146] %v187
                %v189 = vld [vmem:[%s153 + $0x88] sm:%s146]
                %190 = vst [vmem:[%s154 + $0x44] sm:%s146] %v189
                %v191 = vld [vmem:[%s153 + $0x90] sm:%s146]
                %192 = vst [vmem:[%s154 + $0x48] sm:%s146] %v191
                %v193 = vld [vmem:[%s153 + $0x98] sm:%s146]
                %194 = vst [vmem:[%s154 + $0x4c] sm:%s146] %v193
                %v195 = vld [vmem:[%s153 + $0xa0] sm:%s146]
                %196 = vst [vmem:[%s154 + $0x50] sm:%s146] %v195
                %v197 = vld [vmem:[%s153 + $0xa8] sm:%s146]
                %198 = vst [vmem:[%s154 + $0x54] sm:%s146] %v197
                %v199 = vld [vmem:[%s153 + $0xb0] sm:%s146]
                %200 = vst [vmem:[%s154 + $0x58] sm:%s146] %v199
                %v201 = vld [vmem:[%s153 + $0xb8] sm:%s146]
                %202 = vst [vmem:[%s154 + $0x5c] sm:%s146] %v201
                %v203 = vld [vmem:[%s153 + $0xc0] sm:%s146]
                %204 = vst [vmem:[%s154 + $0x60] sm:%s146] %v203
                %v205 = vld [vmem:[%s153 + $0xc8] sm:%s146]
                %206 = vst [vmem:[%s154 + $0x64] sm:%s146] %v205
                %v207 = vld [vmem:[%s153 + $0xd0] sm:%s146]
                %208 = vst [vmem:[%s154 + $0x68] sm:%s146] %v207
                %v209 = vld [vmem:[%s153 + $0xd8] sm:%s146]
                %210 = vst [vmem:[%s154 + $0x6c] sm:%s146] %v209
                %v211 = vld [vmem:[%s153 + $0xe0] sm:%s146]
                %212 = vst [vmem:[%s154 + $0x70] sm:%s146] %v211
                %v213 = vld [vmem:[%s153 + $0xe8] sm:%s146]
                %214 = vst [vmem:[%s154 + $0x74] sm:%s146] %v213
                %v215 = vld [vmem:[%s153 + $0xf0] sm:%s146]
                %216 = vst [vmem:[%s154 + $0x78] sm:%s146] %v215
                %v217 = vld [vmem:[%s153 + $0xf8] sm:%s146]
                %218 = vst [vmem:[%s154 + $0x7c] sm:%s146] %v217
                %v219 = vld [vmem:[%s153 + $0x100] sm:%s146]
                %220 = vst [vmem:[%s154 + $0x80] sm:%s146] %v219
                %v221 = vld [vmem:[%s153 + $0x108] sm:%s146]
                %222 = vst [vmem:[%s154 + $0x84] sm:%s146] %v221
                %v223 = vld [vmem:[%s153 + $0x110] sm:%s146]
                %224 = vst [vmem:[%s154 + $0x88] sm:%s146] %v223
                %v225 = vld [vmem:[%s153 + $0x118] sm:%s146]
                %226 = vst [vmem:[%s154 + $0x8c] sm:%s146] %v225
                %v227 = vld [vmem:[%s153 + $0x120] sm:%s146]
                %228 = vst [vmem:[%s154 + $0x90] sm:%s146] %v227
                %v229 = vld [vmem:[%s153 + $0x128] sm:%s146]
                %230 = vst [vmem:[%s154 + $0x94] sm:%s146] %v229
                %v231 = vld [vmem:[%s153 + $0x130] sm:%s146]
                %232 = vst [vmem:[%s154 + $0x98] sm:%s146] %v231
                %v233 = vld [vmem:[%s153 + $0x138] sm:%s146]
                %234 = vst [vmem:[%s154 + $0x9c] sm:%s146] %v233
                %v235 = vld [vmem:[%s153 + $0x140] sm:%s146]
                %236 = vst [vmem:[%s154 + $0xa0] sm:%s146] %v235
                %v237 = vld [vmem:[%s153 + $0x148] sm:%s146]
                %238 = vst [vmem:[%s154 + $0xa4] sm:%s146] %v237
                %v239 = vld [vmem:[%s153 + $0x150] sm:%s146]
                %240 = vst [vmem:[%s154 + $0xa8] sm:%s146] %v239
                %v241 = vld [vmem:[%s153 + $0x158] sm:%s146]
                %242 = vst [vmem:[%s154 + $0xac] sm:%s146] %v241
                %v243 = vld [vmem:[%s153 + $0x160] sm:%s146]
                %244 = vst [vmem:[%s154 + $0xb0] sm:%s146] %v243
                %v245 = vld [vmem:[%s153 + $0x168] sm:%s146]
                %246 = vst [vmem:[%s154 + $0xb4] sm:%s146] %v245
                %v247 = vld [vmem:[%s153 + $0x170] sm:%s146]
                %248 = vst [vmem:[%s154 + $0xb8] sm:%s146] %v247
                %v249 = vld [vmem:[%s153 + $0x178] sm:%s146]
                %250 = vst [vmem:[%s154 + $0xbc] sm:%s146] %v249
              $region41: #{discriminator224_forward.2} parent=35 // loop_footer
                %s152 = sadd.s32 1, %s148
              $region42: #{discriminator224_forward.2} parent=35 // loop_footer_branch
                %147 = sbr.rel target = $region38
              $region43: #{discriminator224_forward.2} parent=35 // loop_exit
                _
            $region36: #{discriminator224_forward.2} parent=27 // pred_fallthru
              _
          $region28: #{discriminator224_forward.2} parent=23 // pred_fallthru
            _
          %367 = vnop
        $region24: #{discriminator224_forward.2} parent=19 // pred_fallthru
          _
        // Predicated region
        $region62: #{discriminator224_forward.2} parent=19 // pred_check
          %p368 = pneg %p76
        $region63: #{discriminator224_forward.2} parent=19 // pred_check_branch
          %370 = sbr.rel (%p368) target = $region65
        $region64: #{discriminator224_forward.2} parent=19 // pred_region
          %p371 = scmp.lt.s32.totalorder %s9, 1
          %s372 = scalar_select %p371, %s9, 1
          %s373 = scalar_lea.vmem %s2, %s372
        $region65: #{discriminator224_forward.2} parent=19 // pred_fallthru
          _
      $region20: #{discriminator224_forward.2} parent=5 // pred_fallthru
        _
      %p374 = scmp.le.s32.totalorder 1, %s9
      %p375 = scmp.lt.s32.totalorder %s9, 3
      %p376 = pnand %p374, %p375
      %p377 = pneg %p376
      // Predicated region
      $region66: #{discriminator224_forward.2} parent=5 // pred_check
        _
      $region67: #{discriminator224_forward.2} parent=5 // pred_check_branch
        %379 = sbr.rel (%p376) target = $region69
      $region68: #{discriminator224_forward.2} parent=5 // pred_region
        %s380 = ssub.s32 %s9, 1
        %s381 = sand.u32 %s43, 1
        %s382 = sand.u32 %s43, 1
        %s383 = smul.addr %s382, 192
        %s384 = scalar_lea.vmem [#allocation2], %s383
        // Predicated region
        $region70: #{discriminator224_forward.2} parent=68 // pred_check
          %p385 = pneg %p56
        $region71: #{discriminator224_forward.2} parent=68 // pred_check_branch
          %387 = sbr.rel (%p385) target = $region73
        $region72: #{discriminator224_forward.2} parent=68 // pred_region
          _
        $region73: #{discriminator224_forward.2} parent=68 // pred_fallthru
          _
        %p388 = pneg %p30
        %p389 = pneg %p27
        %s390 = sand.u32 %s43, 1
        %s391 = sand.u32 %s43, 1
        %s392 = smul.addr %s391, 192
        %s393 = scalar_lea.vmem [#allocation2], %s392
        %p394 = pneg %p56
        %p395 = pneg %p53
        %p396 = scmp.lt.s32.totalorder %s14, 1
        %s397 = scalar_select %p396, %s14, 1
        %s398 = scalar_lea.vmem %s2, %s397
        %p399 = pneg %p82
        %p400 = pneg %p79
        %p401 = pneg %p108
        %p402 = pneg %p105
        %p403 = scmp.lt.s32.totalorder %s14, 1
        %s404 = scalar_select %p403, %s14, 1
        %s405 = smul.addr %s404, 4
        %s406 = scalar_lea.vmem %s3, %s405
        %p407 = scmp.lt.s32.totalorder %s14, 1
        %s408 = scalar_select %p407, %s14, 1
        %s409 = scalar_lea.vmem %s2, %s408
        %p410 = scmp.lt.s32.totalorder %s14, 1
        %s411 = scalar_select %p410, %s14, 1
        %s412 = smul.addr %s411, 4
        %s413 = scalar_lea.vmem %s3, %s412
        %v415 = vld [vmem:[%s0] sm:$0xff]
        %v416 = vld [vmem:[%s0 + $0x8] sm:$0xf]
        %v417 = vld [vmem:[%s384] sm:$0xf]
        %v418 = vld [vmem:[%s384 + $0x4] sm:$0xf]
        %v419 = vld [vmem:[%s384 + $0x8] sm:$0xf]
        %v420 = vld [vmem:[%s384 + $0xc] sm:$0xf]
        %v421 = vld [vmem:[%s384 + $0x10] sm:$0xf]
        %v422 = vld [vmem:[%s384 + $0x14] sm:$0xf]
        %v423 = vld [vmem:[%s384 + $0x18] sm:$0xf]
        %v424 = vld [vmem:[%s384 + $0x1c] sm:$0xf]
        %v425 = vld [vmem:[%s384 + $0x20] sm:$0xf]
        %v426 = vld [vmem:[%s384 + $0x24] sm:$0xf]
        %v427 = vld [vmem:[%s384 + $0x28] sm:$0xf]
        %v428 = vld [vmem:[%s384 + $0x2c] sm:$0xf]
        %v429 = vld [vmem:[%s384 + $0x30] sm:$0xf]
        %v430 = vld [vmem:[%s384 + $0x34] sm:$0xf]
        %v431 = vld [vmem:[%s384 + $0x38] sm:$0xf]
        %v432 = vld [vmem:[%s384 + $0x3c] sm:$0xf]
        %v433 = vld [vmem:[%s384 + $0x40] sm:$0xf]
        %v434 = vld [vmem:[%s384 + $0x44] sm:$0xf]
        %v435 = vld [vmem:[%s384 + $0x48] sm:$0xf]
        %v436 = vld [vmem:[%s384 + $0x4c] sm:$0xf]
        %v437 = vld [vmem:[%s384 + $0x50] sm:$0xf]
        %v438 = vld [vmem:[%s384 + $0x54] sm:$0xf]
        %v439 = vld [vmem:[%s384 + $0x58] sm:$0xf]
        %v440 = vld [vmem:[%s384 + $0x5c] sm:$0xf]
        %v441 = vld [vmem:[%s384 + $0x60] sm:$0xf]
        %v442 = vld [vmem:[%s384 + $0x64] sm:$0xf]
        %v443 = vld [vmem:[%s384 + $0x68] sm:$0xf]
        %v444 = vld [vmem:[%s384 + $0x6c] sm:$0xf]
        %v445 = vld [vmem:[%s384 + $0x70] sm:$0xf]
        %v446 = vld [vmem:[%s384 + $0x74] sm:$0xf]
        %v447 = vld [vmem:[%s384 + $0x78] sm:$0xf]
        %v448 = vld [vmem:[%s384 + $0x7c] sm:$0xf]
        %v449 = vld [vmem:[%s384 + $0x80] sm:$0xf]
        %v450 = vld [vmem:[%s384 + $0x84] sm:$0xf]
        %v451 = vld [vmem:[%s384 + $0x88] sm:$0xf]
        %v452 = vld [vmem:[%s384 + $0x8c] sm:$0xf]
        %v453 = vld [vmem:[%s384 + $0x90] sm:$0xf]
        %v454 = vld [vmem:[%s384 + $0x94] sm:$0xf]
        %v455 = vld [vmem:[%s384 + $0x98] sm:$0xf]
        %v456 = vld [vmem:[%s384 + $0x9c] sm:$0xf]
        %v457 = vld [vmem:[%s384 + $0xa0] sm:$0xf]
        %v458 = vld [vmem:[%s384 + $0xa4] sm:$0xf]
        %v459 = vld [vmem:[%s384 + $0xa8] sm:$0xf]
        %v460 = vld [vmem:[%s384 + $0xac] sm:$0xf]
        %v461 = vld [vmem:[%s384 + $0xb0] sm:$0xf]
        %v462 = vld [vmem:[%s384 + $0xb4] sm:$0xf]
        %v463 = vld [vmem:[%s384 + $0xb8] sm:$0xf]
        %v464 = vld [vmem:[%s384 + $0xbc] sm:$0xf]
        %v465 = vld [vmem:[%s409] sm:$0x1]
        %v466 = vunpack.c.l.bf16 %v465
        %v467 = vlaneseq
        %v468 = vshrl.u32 %v467, 7
        %v469 = vsub.s32 0, %v468
        %v470 = vrot.slane %v466, %v469
        %v473 = vunpack.c.l.b16 %v415
        %v474 = vunpack.c.h.b16 %v415
        %v475 = vunpack.c.l.b16 %v416
        %v476 = vpack.c.b16 %v473, %v473
        %v477 = vpack.c.b16 %v474, %v474
        %v478 = vpack.c.b16 %v475, %v475
        %v530 = vunpack.c.l.b16 %v417
        %v531 = vunpack.c.l.b16 %v418
        %v532 = vunpack.c.l.b16 %v419
        %v533 = vunpack.c.l.b16 %v420
        %v534 = vunpack.c.l.b16 %v421
        %v535 = vunpack.c.l.b16 %v422
        %v536 = vunpack.c.l.b16 %v423
        %v537 = vunpack.c.l.b16 %v424
        %v538 = vunpack.c.l.b16 %v425
        %v539 = vunpack.c.l.b16 %v426
        %v540 = vunpack.c.l.b16 %v427
        %v541 = vunpack.c.l.b16 %v428
        %v542 = vunpack.c.l.b16 %v429
        %v543 = vunpack.c.l.b16 %v430
        %v544 = vunpack.c.l.b16 %v431
        %v545 = vunpack.c.l.b16 %v432
        %v546 = vunpack.c.l.b16 %v433
        %v547 = vunpack.c.l.b16 %v434
        %v548 = vunpack.c.l.b16 %v435
        %v549 = vunpack.c.l.b16 %v436
        %v550 = vunpack.c.l.b16 %v437
        %v551 = vunpack.c.l.b16 %v438
        %v552 = vunpack.c.l.b16 %v439
        %v553 = vunpack.c.l.b16 %v440
        %v554 = vunpack.c.l.b16 %v441
        %v555 = vunpack.c.l.b16 %v442
        %v556 = vunpack.c.l.b16 %v443
        %v557 = vunpack.c.l.b16 %v444
        %v558 = vunpack.c.l.b16 %v445
        %v559 = vunpack.c.l.b16 %v446
        %v560 = vunpack.c.l.b16 %v447
        %v561 = vunpack.c.l.b16 %v448
        %v562 = vunpack.c.l.b16 %v449
        %v563 = vunpack.c.l.b16 %v450
        %v564 = vunpack.c.l.b16 %v451
        %v565 = vunpack.c.l.b16 %v452
        %v566 = vunpack.c.l.b16 %v453
        %v567 = vunpack.c.l.b16 %v454
        %v568 = vunpack.c.l.b16 %v455
        %v569 = vunpack.c.l.b16 %v456
        %v570 = vunpack.c.l.b16 %v457
        %v571 = vunpack.c.l.b16 %v458
        %v572 = vunpack.c.l.b16 %v459
        %v573 = vunpack.c.l.b16 %v460
        %v574 = vunpack.c.l.b16 %v461
        %v575 = vunpack.c.l.b16 %v462
        %v576 = vunpack.c.l.b16 %v463
        %v577 = vunpack.c.l.b16 %v464
        %v578 = vpack.c.b16 %v531, %v530
        %v579 = vpack.c.b16 %v533, %v532
        %v580 = vpack.c.b16 %v535, %v534
        %v581 = vpack.c.b16 %v537, %v536
        %v582 = vpack.c.b16 %v539, %v538
        %v583 = vpack.c.b16 %v541, %v540
        %v584 = vpack.c.b16 %v543, %v542
        %v585 = vpack.c.b16 %v545, %v544
        %v586 = vpack.c.b16 %v547, %v546
        %v587 = vpack.c.b16 %v549, %v548
        %v588 = vpack.c.b16 %v551, %v550
        %v589 = vpack.c.b16 %v553, %v552
        %v590 = vpack.c.b16 %v555, %v554
        %v591 = vpack.c.b16 %v557, %v556
        %v592 = vpack.c.b16 %v559, %v558
        %v593 = vpack.c.b16 %v561, %v560
        %v594 = vpack.c.b16 %v563, %v562
        %v595 = vpack.c.b16 %v565, %v564
        %v596 = vpack.c.b16 %v567, %v566
        %v597 = vpack.c.b16 %v569, %v568
        %v598 = vpack.c.b16 %v571, %v570
        %v599 = vpack.c.b16 %v573, %v572
        %v600 = vpack.c.b16 %v575, %v574
        %v601 = vpack.c.b16 %v577, %v576
        %626 = vmatprep.subr.bf16.mxu0 0
        %627 = vmatpush1.bf16.msra.mxu0 %v585
        %628 = vmatprep.subr.bf16.mxu0 0
        %629 = vmatpush1.bf16.msra.mxu0 %v584
        %630 = vmatprep.subr.bf16.mxu0 0
        %631 = vmatpush1.bf16.msra.mxu0 %v583
        %632 = vmatprep.subr.bf16.mxu0 0
        %633 = vmatpush1.bf16.msra.mxu0 %v582
        %634 = vmatprep.subr.bf16.mxu0 0
        %635 = vmatpush1.bf16.msra.mxu0 %v581
        %636 = vmatprep.subr.bf16.mxu0 0
        %637 = vmatpush1.bf16.msra.mxu0 %v580
        %638 = vmatprep.subr.bf16.mxu0 0
        %639 = vmatpush1.bf16.msra.mxu0 %v579
        %640 = vmatprep.subr.bf16.mxu0 0
        %641 = vmatpush1.bf16.msra.mxu0 %v578
        %642 = vmatprep.subr.bf16.mxu0 0
        %643 = vmatpush2.bf16.msra.mxu0 %v593
        %644 = vmatprep.subr.bf16.mxu0 0
        %645 = vmatpush2.bf16.msra.mxu0 %v592
        %646 = vmatprep.subr.bf16.mxu0 0
        %647 = vmatpush2.bf16.msra.mxu0 %v591
        %648 = vmatprep.subr.bf16.mxu0 0
        %649 = vmatpush2.bf16.msra.mxu0 %v590
        %650 = vmatprep.subr.bf16.mxu0 0
        %651 = vmatpush2.bf16.msra.mxu0 %v589
        %652 = vmatprep.subr.bf16.mxu0 0
        %653 = vmatpush2.bf16.msra.mxu0 %v588
        %654 = vmatprep.subr.bf16.mxu0 0
        %655 = vmatpush2.bf16.msra.mxu0 %v587
        %656 = vmatprep.subr.bf16.mxu0 0
        %657 = vmatpush2.bf16.msra.mxu0 %v586
        %658 = vmatprep.mubr.bf16.mxu0 %v477
        %659 = vmatmul.mubr.bf16.gmra.mxu0 %v476
        %v660 = vpop.f32.mrf.mxu0
        %v661 = vadd.f32 %v470, %v660
        %v662 = vpop.f32.mrf.mxu0
        %v663 = vpop.f32.mrf.mxu0
        %v664 = vpop.f32.mrf.mxu0
        %665 = vdwg.mxu0
        %666 = vmatprep.subr.bf16.mxu0 0
        %667 = vmatpush1.bf16.msra.mxu0 %v601
        %668 = vmatprep.subr.bf16.mxu0 0
        %669 = vmatpush1.bf16.msra.mxu0 %v600
        %670 = vmatprep.subr.bf16.mxu0 0
        %671 = vmatpush1.bf16.msra.mxu0 %v599
        %672 = vmatprep.subr.bf16.mxu0 0
        %673 = vmatpush1.bf16.msra.mxu0 %v598
        %674 = vmatprep.subr.bf16.mxu0 0
        %675 = vmatpush1.bf16.msra.mxu0 %v597
        %676 = vmatprep.subr.bf16.mxu0 0
        %677 = vmatpush1.bf16.msra.mxu0 %v596
        %678 = vmatprep.subr.bf16.mxu0 0
        %679 = vmatpush1.bf16.msra.mxu0 %v595
        %680 = vmatprep.subr.bf16.mxu0 0
        %681 = vmatpush1.bf16.msra.mxu0 %v594
        %682 = vmatprep.subr.bf16.mxu0 0
        %683 = vmatpush2.bf16.msra.mxu0 0
        %684 = vmatprep.subr.bf16.mxu0 0
        %685 = vmatpush2.bf16.msra.mxu0 0
        %686 = vmatprep.subr.bf16.mxu0 0
        %687 = vmatpush2.bf16.msra.mxu0 0
        %688 = vmatprep.subr.bf16.mxu0 0
        %689 = vmatpush2.bf16.msra.mxu0 0
        %690 = vmatprep.subr.bf16.mxu0 0
        %691 = vmatpush2.bf16.msra.mxu0 0
        %692 = vmatprep.subr.bf16.mxu0 0
        %693 = vmatpush2.bf16.msra.mxu0 0
        %694 = vmatprep.subr.bf16.mxu0 0
        %695 = vmatpush2.bf16.msra.mxu0 0
        %696 = vmatprep.subr.bf16.mxu0 0
        %697 = vmatpush2.bf16.msra.mxu0 0
        %698 = vmatprep.mubr.bf16.mxu0 0
        %699 = vmatmul.mubr.bf16.gmra.mxu0 %v478
        %v700 = vpop.f32.mrf.mxu0
        %v701 = vadd.f32 %v661, %v700
        %v702 = vpop.f32.mrf.mxu0
        %v703 = vpop.f32.mrf.mxu0
        %v704 = vpop.f32.mrf.mxu0
        %705 = vdwg.mxu0
        %v706 = vmax.f32 %v701, 0.0
        %v707 = vpack.c.bf16 %v706, %v706
        %708 = vst [vmem:[%s413] sm:$0xf] %v707
        %p709 = scmp.lt.s32.totalorder %s14, 1
        %s710 = scalar_select %p709, %s14, 1
        %s711 = smul.addr %s710, 4
        %s712 = scalar_lea.vmem %s3, %s711
        // Predicated region
        $region74: #{discriminator224_forward.2} parent=68 // pred_check
          %p713 = pneg %p105
        $region75: #{discriminator224_forward.2} parent=68 // pred_check_branch
          %715 = sbr.rel (%p713) target = $region77
        $region76: #{discriminator224_forward.2} parent=68 // pred_region
          _
        $region77: #{discriminator224_forward.2} parent=68 // pred_fallthru
          _
      $region69: #{discriminator224_forward.2} parent=5 // pred_fallthru
        _
      %p716 = scmp.le.s32.totalorder 2, %s9
      // Predicated region
      $region78: #{discriminator224_forward.2} parent=5 // pred_check
        %p717 = pneg %p716
      $region79: #{discriminator224_forward.2} parent=5 // pred_check_branch
        %719 = sbr.rel (%p717) target = $region81
      $region80: #{discriminator224_forward.2} parent=5 // pred_region
        %s720 = ssub.s32 %s9, 2
        // Predicated region
        $region82: #{discriminator224_forward.2} parent=80 // pred_check
          %p721 = pneg %p111
        $region83: #{discriminator224_forward.2} parent=80 // pred_check_branch
          %723 = sbr.rel (%p721) target = $region85
        $region84: #{discriminator224_forward.2} parent=80 // pred_region
          %p724 = scmp.lt.s32.totalorder %s15, 1
          %s725 = scalar_select %p724, %s15, 1
          %s726 = smul.addr %s725, 4
          %s727 = scalar_lea.vmem %s3, %s726
        $region85: #{discriminator224_forward.2} parent=80 // pred_fallthru
          _
      $region81: #{discriminator224_forward.2} parent=5 // pred_fallthru
        _
    $region6: #{discriminator224_forward.2} parent=1 // loop_footer
      %s13 = sadd.s32 1, %s9
    $region7: #{discriminator224_forward.2} parent=1 // loop_footer_branch
      %8 = sbr.rel target = $region3
    $region8: #{discriminator224_forward.2} parent=1 // loop_exit
      _

</llo_original>
